<compile_context>
chip_gen: v5e
topology: v5e:2x2
jax: 0.10.0
libtpu: 0.0.40
codegen_flags: <defaults>
</compile_context>

<pallas_src>
import math
import functools

import jax
import jax.numpy as jnp
from jax.experimental import pallas as pl
from jax.experimental.pallas import tpu as pltpu


def _round_up(x, m):
    return ((x + m - 1) // m) * m


# ----------------------------------------------------------------------------
# Pallas kernel: one grid step = (batch tile, layer)
# ----------------------------------------------------------------------------
def _phased_lstm_stack_kernel(
    x_ref, h0_ref, c0_ref, w_ref, b_ref, t_ref, tg_ref,
    h_out_ref, c_out_ref,
    carry_ref,
    *, k_pad: int, hidden_pad: int, leak: float,
):
    Kp = k_pad
    Hp = hidden_pad
    layer = pl.program_id(1)

    # Layer 0 consumes the external input; deeper layers consume the previous
    # layer's hidden output (written into carry[:, :Hp] at the end of the
    # previous grid step; stale columns beyond H are multiplied by zero weight
    # rows).  carry[:, Kp:Kp+Hp] holds THIS layer's h_prev, so the two matmuls
    # (x @ W_ih^T and h @ W_hh^T) fuse into a single MXU pass.
    @pl.when(layer == 0)
    def _():
        carry_ref[:, 0:Kp] = x_ref[...]

    h_prev = h0_ref[0]                             # (TB, Hp) f32
    c_prev = c0_ref[0]                             # (TB, Hp) f32
    carry_ref[:, Kp:Kp + Hp] = h_prev.astype(carry_ref.dtype)

    # Single fused matmul: [x | h_prev] @ [W_ih^T ; W_hh^T]  (bf16 in, f32 acc)
    chunks = jnp.dot(carry_ref[...], w_ref[0],
                     preferred_element_type=jnp.float32) + b_ref[0]

    # Gate order [i | f | o | c]; boundaries are multiples of Hp (lane aligned).
    # sigmoid(x) == 0.5*tanh(0.5*x) + 0.5  -> one EUP pass instead of exp+recip.
    ifo = 0.5 * jnp.tanh(0.5 * chunks[:, 0:3 * Hp]) + 0.5
    input_gate = ifo[:, 0:Hp]
    forget_gate = ifo[:, Hp:2 * Hp]
    output_gate = ifo[:, 2 * Hp:3 * Hp]
    cell_in = jnp.tanh(chunks[:, 3 * Hp:4 * Hp])

    new_c = forget_gate * c_prev + input_gate * cell_in
    new_h = output_gate * jnp.tanh(new_c)

    # ---- phased (time) gate: no divides, no fmod ----
    tg = tg_ref[0]                    # (8, Hp)
    phase = tg[0:1, :]
    inv_period = tg[1:2, :]
    ratio_on = tg[2:3, :]
    inv2_ratio = tg[3:4, :]           # = 2 / ratio_on

    # torch.fmod(x, p) / p == u - trunc(u)  with u = x / p   (trunc toward zero
    # preserves torch.fmod's sign behavior for t < phase).
    u = (t_ref[...] - phase) * inv_period          # (TB,1)-(1,Hp) -> (TB,Hp)
    cycle_ratio = u - jnp.trunc(u)

    k_up = cycle_ratio * inv2_ratio
    k_down = 2.0 - k_up
    k_closed = leak * cycle_ratio
    k = jnp.where(cycle_ratio < ratio_on, k_down, k_closed)
    k = jnp.where(cycle_ratio < 0.5 * ratio_on, k_up, k)

    # Blend rewritten as prev + k*(new - prev).
    c_gated = c_prev + k * (new_c - c_prev)
    h_gated = h_prev + k * (new_h - h_prev)

    c_out_ref[0] = c_gated
    h_out_ref[0] = h_gated

    # Carry this layer's h (bf16) as the next layer's matmul input; the last
    # layer skips the cast + full-width store.
    @pl.when(layer + 1 < pl.num_programs(1))
    def _():
        carry_ref[:, 0:Hp] = h_gated.astype(carry_ref.dtype)


# ----------------------------------------------------------------------------
# One-time parameter packing (pre-transpose, pad, fuse, precompute reciprocals)
# ----------------------------------------------------------------------------
def pack_phased_lstm_params(cell_params, input_size, hidden_size):
    H = hidden_size
    Hp = _round_up(H, 128)
    KHp = max(_round_up(input_size, 128), Hp)
    L = len(cell_params)

    w_l, b_l, tg_l = [], [], []
    for li, p in enumerate(cell_params):
        din = input_size if li == 0 else H

        # W_ih: (4H, din) -> gate-major (4, H, din) -> pad -> transpose -> (KHp, 4*Hp)
        w_ih = p["w_ih"].reshape(4, H, din)
        w_ih = jnp.pad(w_ih, ((0, 0), (0, Hp - H), (0, KHp - din)))
        w_ih = jnp.transpose(w_ih, (2, 0, 1)).reshape(KHp, 4 * Hp)

        w_hh = p["w_hh"].reshape(4, H, H)
        w_hh = jnp.pad(w_hh, ((0, 0), (0, Hp - H), (0, Hp - H)))
        w_hh = jnp.transpose(w_hh, (2, 0, 1)).reshape(Hp, 4 * Hp)

        # Fused [W_ih^T ; W_hh^T]: one matmul per layer in the kernel.
        w_l.append(jnp.concatenate([w_ih, w_hh], axis=0))        # (KHp+Hp, 4Hp)

        bias = jnp.pad(p["bias"].reshape(4, H),
                       ((0, 0), (0, Hp - H))).reshape(1, 4 * Hp)
        b_l.append(bias)

        # Pack all time-gate vectors into ONE (8, Hp) block (one DMA per step).
        # Padded lanes get period = ratio_on = 1 so the reciprocals stay finite.
        period = jnp.pad(p["period"], (0, Hp - H), constant_values=1.0)
        phase = jnp.pad(p["phase"], (0, Hp - H))
        ratio = jnp.pad(p["ratio_on"], (0, Hp - H), constant_values=1.0)
        tg = jnp.zeros((8, Hp), jnp.float32)
        tg = tg.at[0].set(phase)
        tg = tg.at[1].set(1.0 / period)
        tg = tg.at[2].set(ratio)
        tg = tg.at[3].set(2.0 / ratio)
        tg_l.append(tg)

    return {
        "w": jnp.stack(w_l).astype(jnp.bfloat16),        # (L, KHp+Hp, 4Hp)
        "bias": jnp.stack(b_l).astype(jnp.float32),      # (L, 1, 4Hp)
        "tgate": jnp.stack(tg_l).astype(jnp.float32),    # (L, 8, Hp)
        "dims": (input_size, H, Hp, KHp, L),              # python ints (static)
    }


# ----------------------------------------------------------------------------
# Forward wrapper: whole layer stack in one pallas_call
# ----------------------------------------------------------------------------
_MAX_BATCH_TILE = 512   # beyond this the batch is split (weights re-streamed per tile)


def phased_lstm_forward(sequence, times, hidden_states, packed, *, leak=0.001):
    d_in, H, Hp, KHp, L = packed["dims"]
    B = sequence.shape[0]

    # Keep the whole (padded) batch in one tile whenever possible: every extra
    # batch tile re-streams all layer weights from HBM (the dominant cost).
    Bp = _round_up(max(B, 1), 16)                  # bf16 sublane pack = 16
    if Bp <= _MAX_BATCH_TILE:
        TB, n_b = Bp, 1
    else:
        TB = _MAX_BATCH_TILE
        Bp = _round_up(Bp, TB)
        n_b = Bp // TB
        # TODO(synk): for n_b > 1, flip the grid to (L, n_b) with a full-batch
        # carry so the weight block stays resident across consecutive batch tiles.

    x_pad = jnp.zeros((Bp, KHp), jnp.bfloat16).at[:B, :d_in].set(
        sequence.astype(jnp.bfloat16))
    t_pad = jnp.zeros((Bp, 1), jnp.float32).at[:B, 0].set(times.astype(jnp.float32))
    h0 = jnp.zeros((L, Bp, Hp), jnp.float32)
    c0 = jnp.zeros((L, Bp, Hp), jnp.float32)
    for i, (h, c) in enumerate(hidden_states):
        h0 = h0.at[i, :B, :H].set(h.astype(jnp.float32))
        c0 = c0.at[i, :B, :H].set(c.astype(jnp.float32))

    G4 = 4 * Hp
    KH = KHp + Hp
    kern = functools.partial(_phased_lstm_stack_kernel,
                             k_pad=KHp, hidden_pad=Hp, leak=leak)

    in_specs = [
        pl.BlockSpec((TB, KHp), lambda b, l: (b, 0)),        # x (bf16)
        pl.BlockSpec((1, TB, Hp), lambda b, l: (l, b, 0)),   # h0
        pl.BlockSpec((1, TB, Hp), lambda b, l: (l, b, 0)),   # c0
        pl.BlockSpec((1, KH, G4), lambda b, l: (l, 0, 0)),   # fused [W_ih^T;W_hh^T] (bf16)
        pl.BlockSpec((1, 1, G4), lambda b, l: (l, 0, 0)),    # bias
        pl.BlockSpec((TB, 1), lambda b, l: (b, 0)),          # times
        pl.BlockSpec((1, 8, Hp), lambda b, l: (l, 0, 0)),    # packed time-gate params
    ]
    out_specs = (
        pl.BlockSpec((1, TB, Hp), lambda b, l: (l, b, 0)),   # h per layer
        pl.BlockSpec((1, TB, Hp), lambda b, l: (l, b, 0)),   # c per layer
    )

    # Explicit VMEM budget sized from the double-buffered working set.
    per_step = (KH * G4 * 2                # fused weight block (bf16)
                + TB * KHp * 2             # x block
                + 4 * TB * Hp * 4          # h0, c0, h_out, c_out blocks
                + G4 * 4 + 8 * Hp * 4 + TB * 4)
    need = 2 * per_step + TB * KH * 2 + 6 * TB * G4 * 4   # 2x buffers + carry + f32 temps
    try:
        cap = int(pltpu.get_tpu_info().vmem_capacity_bytes)
    except Exception:
        cap = 64 << 20                     # v7x per-TC floor
    vmem_limit = int(min(cap - (2 << 20), max(need, 32 << 20)))

    h_all, c_all = pl.pallas_call(
        kern,
        grid=(n_b, L),
        out_shape=(
            jax.ShapeDtypeStruct((L, Bp, Hp), jnp.float32),
            jax.ShapeDtypeStruct((L, Bp, Hp), jnp.float32),
        ),
        in_specs=in_specs,
        out_specs=out_specs,
        scratch_shapes=[pltpu.VMEM((TB, KH), jnp.bfloat16)],   # [x | h_prev] matmul input
        compiler_params=pltpu.CompilerParams(
            dimension_semantics=("parallel", "arbitrary"),
            vmem_limit_bytes=vmem_limit),
        # TODO(synk): for Hp >= 1024 on v7x (64 MiB VMEM/TC) add a gate-column grid
        # axis with hidden-chunk-major weight columns so per-step weight DMAs stay small.
        # TODO(synk): if this stack is driven by a per-timestep outer loop, move the
        # time loop into the kernel (leading "arbitrary" axis, weights resident).
    )(x_pad, h0, c0, packed["w"], packed["bias"], t_pad, packed["tgate"])

    out = h_all[L - 1, :B, :H]
    new_states = [(h_all[i, :B, :H], c_all[i, :B, :H]) for i in range(L)]
    return out, new_states


# ----------------------------------------------------------------------------
# Parameter initialization (mimics the PyTorch __init__)
# ----------------------------------------------------------------------------
def init_cell_params(key, input_size, hidden_size,
                     period_init_min=1.0, period_init_max=3.0, ratio_on=0.2):
    H = hidden_size
    k_wih, k_whh, k_b, k_per, k_ph = jax.random.split(key, 5)

    bound_ih = 1.0 / math.sqrt(input_size)
    bound_hh = 1.0 / math.sqrt(H)
    bound_b = 1.0 / math.sqrt(4 * H)

    w_ih = jax.random.uniform(k_wih, (4 * H, input_size), jnp.float32,
                              -bound_ih, bound_ih)
    w_hh = jax.random.uniform(k_whh, (4 * H, H), jnp.float32,
                              -bound_hh, bound_hh)
    bias = jax.random.uniform(k_b, (4 * H,), jnp.float32, -bound_b, bound_b)
    period = jnp.exp(jax.random.uniform(k_per, (H,), jnp.float32,
                                        period_init_min, period_init_max))
    phase = jax.random.uniform(k_ph, (H,), jnp.float32, 0.0, 1.0) * period
    ratio = jnp.full((H,), ratio_on, jnp.float32)
    return {"w_ih": w_ih, "w_hh": w_hh, "bias": bias,
            "period": period, "phase": phase, "ratio_on": ratio}


# ----------------------------------------------------------------------------
# Pure-JAX reference (module semantics; mm_dtype mirrors the kernel's bf16 matmuls)
# ----------------------------------------------------------------------------
def _cell_ref(x, h_prev, c_prev, times, p, leak=0.001, mm_dtype=jnp.float32):
    H = h_prev.shape[1]
    chunks = (
        jnp.dot(x.astype(mm_dtype), p["w_ih"].T.astype(mm_dtype),
                preferred_element_type=jnp.float32)
        + jnp.dot(h_prev.astype(mm_dtype), p["w_hh"].T.astype(mm_dtype),
                  preferred_element_type=jnp.float32)
        + p["bias"]
    )
    i_g = jax.nn.sigmoid(chunks[:, :H])
    f_g = jax.nn.sigmoid(chunks[:, H:2 * H])
    o_g = jax.nn.sigmoid(chunks[:, 2 * H:3 * H])
    xh_c = chunks[:, 3 * H:]
    new_c = f_g * c_prev + i_g * jnp.tanh(xh_c)
    new_h = o_g * jnp.tanh(new_c)
    tt = times.reshape(-1, 1)
    shifted = tt - p["phase"]
    cr = jnp.fmod(shifted, p["period"]) / p["period"]
    k_up = 2 * cr / p["ratio_on"]
    k_down = 2 - k_up
    k_closed = leak * cr
    k = jnp.where(cr < p["ratio_on"], k_down, k_closed)
    k = jnp.where(cr < 0.5 * p["ratio_on"], k_up, k)
    return k * new_h + (1 - k) * h_prev, k * new_c + (1 - k) * c_prev


if __name__ == "__main__":
    key = jax.random.PRNGKey(0)
    B, D_IN, H, NUM_LAYERS = 2, 16, 32, 2

    k_seq, k_t, k_p0, k_p1 = jax.random.split(key, 4)
    sequence = jax.random.normal(k_seq, (B, D_IN), jnp.float32)
    times = jax.random.uniform(k_t, (B,), jnp.float32, 0.0, 10.0)

    cell_params = [init_cell_params(k_p0, D_IN, H),
                   init_cell_params(k_p1, H, H)]
    packed = pack_phased_lstm_params(cell_params, D_IN, H)

    zeros = jnp.zeros((B, H), jnp.float32)
    hidden_states = [(zeros, zeros) for _ in range(NUM_LAYERS)]

    out, new_states = phased_lstm_forward(sequence, times, hidden_states, packed)
    out = jax.block_until_ready(out)

    # Sanity check vs. a pure-JAX reference with matching (bf16-matmul, f32-accum)
    # numerics.  Tolerance relaxed vs. a full-f32 run because weights are bf16.
    cur, states_ref = sequence, [(zeros, zeros) for _ in range(NUM_LAYERS)]
    for i, p in enumerate(cell_params):
        h_r, c_r = _cell_ref(cur, states_ref[i][0], states_ref[i][1], times, p,
                             leak=0.001, mm_dtype=jnp.bfloat16)
        states_ref[i] = (h_r, c_r)
        cur = h_r

    assert jnp.allclose(out, cur, atol=5e-2, rtol=5e-2), "output mismatch vs reference"
    for (h_k, c_k), (h_r, c_r) in zip(new_states, states_ref):
        assert jnp.allclose(h_k, h_r, atol=5e-2, rtol=5e-2), "h state mismatch"
        assert jnp.allclose(c_k, c_r, atol=5e-2, rtol=5e-2), "c state mismatch"

    print("KERNEL_OK")
</pallas_src>

<mosaic_0001>
module attributes {stable_mosaic.version = 11 : i64} {
  func.func @_phased_lstm_stack_kernel(%arg0: i32, %arg1: i32, %arg2: memref<16x128xbf16, #tpu.memory_space<vmem>>, %arg3: memref<1x16x128xf32, #tpu.memory_space<vmem>>, %arg4: memref<1x16x128xf32, #tpu.memory_space<vmem>>, %arg5: memref<1x256x512xbf16, #tpu.memory_space<vmem>>, %arg6: memref<1x1x512xf32, #tpu.memory_space<vmem>>, %arg7: memref<16x1xf32, #tpu.memory_space<vmem>>, %arg8: memref<1x8x128xf32, #tpu.memory_space<vmem>>, %arg9: memref<1x16x128xf32, #tpu.memory_space<vmem>>, %arg10: memref<1x16x128xf32, #tpu.memory_space<vmem>>, %arg11: memref<16x256xbf16, #tpu.memory_space<vmem>>) attributes {dimension_semantics = [#tpu.dimension_semantics<parallel>, #tpu.dimension_semantics<arbitrary>], iteration_bounds = array<i64: 1, 2>, scalar_prefetch = 0 : i64, scratch_operands = 1 : i64, tpu.core_type = #tpu.core_type<tc>, window_params = [{transform_indices = @transform_0, window_bounds = array<i64: 16, 128>}, {transform_indices = @transform_1, window_bounds = array<i64: 1, 16, 128>}, {transform_indices = @transform_2, window_bounds = array<i64: 1, 16, 128>}, {transform_indices = @transform_3, window_bounds = array<i64: 1, 256, 512>}, {transform_indices = @transform_4, window_bounds = array<i64: 1, 1, 512>}, {transform_indices = @transform_5, window_bounds = array<i64: 16, 1>}, {transform_indices = @transform_6, window_bounds = array<i64: 1, 8, 128>}, {transform_indices = @transform_7, window_bounds = array<i64: 1, 16, 128>}, {transform_indices = @transform_8, window_bounds = array<i64: 1, 16, 128>}]} {
    %c0_i32 = arith.constant 0 : i32
    %0 = arith.cmpi eq, %arg1, %c0_i32 : i32
    %1 = arith.extui %0 : i1 to i32
    %c0_i32_0 = arith.constant 0 : i32
    %2 = arith.cmpi ne, %1, %c0_i32_0 : i32
    scf.if %2 {
      %c0_34 = arith.constant 0 : index
      %c0_35 = arith.constant 0 : index
      %83 = vector.load %arg2[%c0_34, %c0_35] : memref<16x128xbf16, #tpu.memory_space<vmem>>, vector<16x128xbf16>
      %c0_36 = arith.constant 0 : index
      %c0_37 = arith.constant 0 : index
      %84 = vector.load %arg11[%c0_36, %c0_37] : memref<16x256xbf16, #tpu.memory_space<vmem>>, vector<16x128xbf16>
      tpu.vector_store %arg11[%c0_36, %c0_37], %83 {strides = array<i32>} : memref<16x256xbf16, #tpu.memory_space<vmem>>, vector<16x128xbf16>,
    } else {
    }
    %c0 = arith.constant 0 : index
    %c0_1 = arith.constant 0 : index
    %c0_2 = arith.constant 0 : index
    %3 = vector.load %arg3[%c0, %c0_1, %c0_2] : memref<1x16x128xf32, #tpu.memory_space<vmem>>, vector<1x16x128xf32>
    %4 = vector.shape_cast %3 : vector<1x16x128xf32> to vector<16x128xf32>
    %c0_3 = arith.constant 0 : index
    %c0_4 = arith.constant 0 : index
    %c0_5 = arith.constant 0 : index
    %5 = vector.load %arg4[%c0_3, %c0_4, %c0_5] : memref<1x16x128xf32, #tpu.memory_space<vmem>>, vector<1x16x128xf32>
    %6 = vector.shape_cast %5 : vector<1x16x128xf32> to vector<16x128xf32>
    %7 = arith.truncf %4 : vector<16x128xf32> to vector<16x128xbf16>
    %c0_6 = arith.constant 0 : index
    %c128 = arith.constant 128 : index
    %8 = vector.load %arg11[%c0_6, %c128] : memref<16x256xbf16, #tpu.memory_space<vmem>>, vector<16x128xbf16>
    tpu.vector_store %arg11[%c0_6, %c128], %7 {strides = array<i32>} : memref<16x256xbf16, #tpu.memory_space<vmem>>, vector<16x128xbf16>,
    %c0_7 = arith.constant 0 : index
    %c0_8 = arith.constant 0 : index
    %9 = vector.load %arg11[%c0_7, %c0_8] : memref<16x256xbf16, #tpu.memory_space<vmem>>, vector<16x256xbf16>
    %c0_9 = arith.constant 0 : index
    %c0_10 = arith.constant 0 : index
    %c0_11 = arith.constant 0 : index
    %10 = vector.load %arg5[%c0_9, %c0_10, %c0_11] : memref<1x256x512xbf16, #tpu.memory_space<vmem>>, vector<1x256x512xbf16>
    %11 = vector.shape_cast %10 : vector<1x256x512xbf16> to vector<256x512xbf16>
    %cst = arith.constant dense<0.000000e+00> : vector<16x512xf32>
    %12 = tpu.matmul %9, %11, %cst {dimension_numbers = #tpu.dot_dimension_numbers<[1], [0], [0], [1], [0, 0, 1, 1], [], []>} : vector<16x256xbf16>, vector<256x512xbf16>, vector<16x512xf32> -> vector<16x512xf32>
    %c0_12 = arith.constant 0 : index
    %c0_13 = arith.constant 0 : index
    %c0_14 = arith.constant 0 : index
    %13 = vector.load %arg6[%c0_12, %c0_13, %c0_14] : memref<1x1x512xf32, #tpu.memory_space<vmem>>, vector<1x1x512xf32>
    %14 = vector.shape_cast %13 : vector<1x1x512xf32> to vector<1x512xf32>
    %15 = vector.broadcast %14 : vector<1x512xf32> to vector<16x512xf32>
    %16 = arith.addf %12, %15 : vector<16x512xf32>
    %17 = vector.extract_strided_slice %16 {offsets = [0, 0], sizes = [16, 384], strides = [1, 1]} : vector<16x512xf32> to vector<16x384xf32>
    %cst_15 = arith.constant 5.000000e-01 : f32
    %18 = vector.broadcast %cst_15 : f32 to vector<16x384xf32>
    %19 = arith.mulf %18, %17 : vector<16x384xf32>
    %20 = math.tanh %19 : vector<16x384xf32>
    %cst_16 = arith.constant 5.000000e-01 : f32
    %21 = vector.broadcast %cst_16 : f32 to vector<16x384xf32>
    %22 = arith.mulf %21, %20 : vector<16x384xf32>
    %cst_17 = arith.constant 5.000000e-01 : f32
    %23 = vector.broadcast %cst_17 : f32 to vector<16x384xf32>
    %24 = arith.addf %22, %23 : vector<16x384xf32>
    %25 = vector.extract_strided_slice %24 {offsets = [0, 0], sizes = [16, 128], strides = [1, 1]} : vector<16x384xf32> to vector<16x128xf32>
    %26 = vector.extract_strided_slice %24 {offsets = [0, 128], sizes = [16, 128], strides = [1, 1]} : vector<16x384xf32> to vector<16x128xf32>
    %27 = vector.extract_strided_slice %24 {offsets = [0, 256], sizes = [16, 128], strides = [1, 1]} : vector<16x384xf32> to vector<16x128xf32>
    %28 = vector.extract_strided_slice %16 {offsets = [0, 384], sizes = [16, 128], strides = [1, 1]} : vector<16x512xf32> to vector<16x128xf32>
    %29 = math.tanh %28 : vector<16x128xf32>
    %30 = arith.mulf %26, %6 : vector<16x128xf32>
    %31 = arith.mulf %25, %29 : vector<16x128xf32>
    %32 = arith.addf %30, %31 : vector<16x128xf32>
    %33 = math.tanh %32 : vector<16x128xf32>
    %34 = arith.mulf %27, %33 : vector<16x128xf32>
    %c0_18 = arith.constant 0 : index
    %c0_19 = arith.constant 0 : index
    %c0_20 = arith.constant 0 : index
    %35 = vector.load %arg8[%c0_18, %c0_19, %c0_20] : memref<1x8x128xf32, #tpu.memory_space<vmem>>, vector<1x8x128xf32>
    %36 = vector.shape_cast %35 : vector<1x8x128xf32> to vector<8x128xf32>
    %37 = vector.extract_strided_slice %36 {offsets = [0, 0], sizes = [1, 128], strides = [1, 1]} : vector<8x128xf32> to vector<1x128xf32>
    %38 = vector.extract_strided_slice %36 {offsets = [1, 0], sizes = [1, 128], strides = [1, 1]} : vector<8x128xf32> to vector<1x128xf32>
    %39 = vector.extract_strided_slice %36 {offsets = [2, 0], sizes = [1, 128], strides = [1, 1]} : vector<8x128xf32> to vector<1x128xf32>
    %40 = vector.extract_strided_slice %36 {offsets = [3, 0], sizes = [1, 128], strides = [1, 1]} : vector<8x128xf32> to vector<1x128xf32>
    %c0_21 = arith.constant 0 : index
    %c0_22 = arith.constant 0 : index
    %41 = vector.load %arg7[%c0_21, %c0_22] : memref<16x1xf32, #tpu.memory_space<vmem>>, vector<16x1xf32>
    %42 = vector.broadcast %41 : vector<16x1xf32> to vector<16x128xf32>
    %43 = vector.broadcast %37 : vector<1x128xf32> to vector<16x128xf32>
    %44 = arith.subf %42, %43 : vector<16x128xf32>
    %45 = vector.broadcast %38 : vector<1x128xf32> to vector<16x128xf32>
    %46 = arith.mulf %44, %45 : vector<16x128xf32>
    %cst_23 = arith.constant 0.000000e+00 : f32
    %47 = vector.broadcast %cst_23 : f32 to vector<16x128xf32>
    %48 = arith.cmpf olt, %46, %47 : vector<16x128xf32>
    %49 = math.ceil %46 : vector<16x128xf32>
    %50 = math.floor %46 : vector<16x128xf32>
    %51 = arith.select %48, %49, %50 : vector<16x128xi1>, vector<16x128xf32>
    %52 = arith.subf %46, %51 : vector<16x128xf32>
    %53 = vector.broadcast %40 : vector<1x128xf32> to vector<16x128xf32>
    %54 = arith.mulf %52, %53 : vector<16x128xf32>
    %cst_24 = arith.constant 2.000000e+00 : f32
    %55 = vector.broadcast %cst_24 : f32 to vector<16x128xf32>
    %56 = arith.subf %55, %54 : vector<16x128xf32>
    %cst_25 = arith.constant 1.000000e-03 : f32
    %57 = vector.broadcast %cst_25 : f32 to vector<16x128xf32>
    %58 = arith.mulf %57, %52 : vector<16x128xf32>
    %59 = vector.broadcast %39 : vector<1x128xf32> to vector<16x128xf32>
    %60 = arith.cmpf olt, %52, %59 : vector<16x128xf32>
    %61 = arith.select %60, %56, %58 : vector<16x128xi1>, vector<16x128xf32>
    %cst_26 = arith.constant 5.000000e-01 : f32
    %62 = vector.broadcast %cst_26 : f32 to vector<1x128xf32>
    %63 = arith.mulf %62, %39 : vector<1x128xf32>
    %64 = vector.broadcast %63 : vector<1x128xf32> to vector<16x128xf32>
    %65 = arith.cmpf olt, %52, %64 : vector<16x128xf32>
    %66 = arith.select %65, %54, %61 : vector<16x128xi1>, vector<16x128xf32>
    %67 = arith.subf %32, %6 : vector<16x128xf32>
    %68 = arith.mulf %66, %67 : vector<16x128xf32>
    %69 = arith.addf %6, %68 : vector<16x128xf32>
    %70 = arith.subf %34, %4 : vector<16x128xf32>
    %71 = arith.mulf %66, %70 : vector<16x128xf32>
    %72 = arith.addf %4, %71 : vector<16x128xf32>
    %c0_27 = arith.constant 0 : index
    %c0_28 = arith.constant 0 : index
    %c0_29 = arith.constant 0 : index
    %73 = vector.load %arg10[%c0_27, %c0_28, %c0_29] : memref<1x16x128xf32, #tpu.memory_space<vmem>>, vector<1x16x128xf32>
    %74 = vector.shape_cast %73 : vector<1x16x128xf32> to vector<16x128xf32>
    %75 = vector.shape_cast %69 : vector<16x128xf32> to vector<1x16x128xf32>
    tpu.vector_store %arg10[%c0_27, %c0_28, %c0_29], %75 {strides = array<i32>} : memref<1x16x128xf32, #tpu.memory_space<vmem>>, vector<1x16x128xf32>,
    %c0_30 = arith.constant 0 : index
    %c0_31 = arith.constant 0 : index
    %c0_32 = arith.constant 0 : index
    %76 = vector.load %arg9[%c0_30, %c0_31, %c0_32] : memref<1x16x128xf32, #tpu.memory_space<vmem>>, vector<1x16x128xf32>
    %77 = vector.shape_cast %76 : vector<1x16x128xf32> to vector<16x128xf32>
    %78 = vector.shape_cast %72 : vector<16x128xf32> to vector<1x16x128xf32>
    tpu.vector_store %arg9[%c0_30, %c0_31, %c0_32], %78 {strides = array<i32>} : memref<1x16x128xf32, #tpu.memory_space<vmem>>, vector<1x16x128xf32>,
    %c1_i32 = arith.constant 1 : i32
    %79 = arith.addi %arg1, %c1_i32 : i32
    %c2_i32 = arith.constant 2 : i32
    %80 = arith.cmpi slt, %79, %c2_i32 : i32
    %81 = arith.extui %80 : i1 to i32
    %c0_i32_33 = arith.constant 0 : i32
    %82 = arith.cmpi ne, %81, %c0_i32_33 : i32
    scf.if %82 {
      %83 = arith.truncf %72 : vector<16x128xf32> to vector<16x128xbf16>
      %c0_34 = arith.constant 0 : index
      %c0_35 = arith.constant 0 : index
      %84 = vector.load %arg11[%c0_34, %c0_35] : memref<16x256xbf16, #tpu.memory_space<vmem>>, vector<16x128xbf16>
      tpu.vector_store %arg11[%c0_34, %c0_35], %83 {strides = array<i32>} : memref<16x256xbf16, #tpu.memory_space<vmem>>, vector<16x128xbf16>,
    } else {
    }
    return
  }
  func.func @transform_0(%arg0: i32, %arg1: i32) -> (i32, i32) {
    %c0_i32 = arith.constant 0 : i32
    %c0_i32_0 = arith.constant 0 : i32
    return %arg0, %c0_i32 : i32, i32
  }
  func.func @transform_1(%arg0: i32, %arg1: i32) -> (i32, i32, i32) {
    %c0_i32 = arith.constant 0 : i32
    %c0_i32_0 = arith.constant 0 : i32
    return %arg1, %arg0, %c0_i32 : i32, i32, i32
  }
  func.func @transform_2(%arg0: i32, %arg1: i32) -> (i32, i32, i32) {
    %c0_i32 = arith.constant 0 : i32
    %c0_i32_0 = arith.constant 0 : i32
    return %arg1, %arg0, %c0_i32 : i32, i32, i32
  }
  func.func @transform_3(%arg0: i32, %arg1: i32) -> (i32, i32, i32) {
    %c0_i32 = arith.constant 0 : i32
    %c0_i32_0 = arith.constant 0 : i32
    %c0_i32_1 = arith.constant 0 : i32
    return %arg1, %c0_i32, %c0_i32_0 : i32, i32, i32
  }
  func.func @transform_4(%arg0: i32, %arg1: i32) -> (i32, i32, i32) {
    %c0_i32 = arith.constant 0 : i32
    %c0_i32_0 = arith.constant 0 : i32
    %c0_i32_1 = arith.constant 0 : i32
    return %arg1, %c0_i32, %c0_i32_0 : i32, i32, i32
  }
  func.func @transform_5(%arg0: i32, %arg1: i32) -> (i32, i32) {
    %c0_i32 = arith.constant 0 : i32
    %c0_i32_0 = arith.constant 0 : i32
    return %arg0, %c0_i32 : i32, i32
  }
  func.func @transform_6(%arg0: i32, %arg1: i32) -> (i32, i32, i32) {
    %c0_i32 = arith.constant 0 : i32
    %c0_i32_0 = arith.constant 0 : i32
    %c0_i32_1 = arith.constant 0 : i32
    return %arg1, %c0_i32, %c0_i32_0 : i32, i32, i32
  }
  func.func @transform_7(%arg0: i32, %arg1: i32) -> (i32, i32, i32) {
    %c0_i32 = arith.constant 0 : i32
    %c0_i32_0 = arith.constant 0 : i32
    return %arg1, %arg0, %c0_i32 : i32, i32, i32
  }
  func.func @transform_8(%arg0: i32, %arg1: i32) -> (i32, i32, i32) {
    %c0_i32 = arith.constant 0 : i32
    %c0_i32_0 = arith.constant 0 : i32
    return %arg1, %arg0, %c0_i32 : i32, i32, i32
  }
}

</mosaic_0001>

<llo_original>
// kernel: tpu_custom_call.1
$region0: #{tpu_custom_call.1}
  #allocation0 [shape = 'u32[]', space=smem, size = 0x4, offset = 0x4, fixed_abs, tag = 'smem constant byte address 0x4 - core index']
  #allocation1 [shape = 'u32[72,128]{1,0:T(1,128)}', space=vmem, size = 0x9000, scoped, tag = 'internal scratch']
  #allocation2 [shape = 'bf16[16,256]{1,0:T(8,128)(2,1)}', space=vmem, size = 0x2000, scoped, tag = 'scratch operand']
  %s0 = inlined_call_operand.hbm [shape: bf16[16,128], index: 0, kind: input, shape index: {}]
  %s1 = inlined_call_operand.hbm [shape: f32[2,16,128], index: 1, kind: input, shape index: {}]
  %s2 = inlined_call_operand.hbm [shape: f32[2,16,128], index: 2, kind: input, shape index: {}]
  %s3 = inlined_call_operand.hbm [shape: bf16[2,256,512], index: 3, kind: input, shape index: {}]
  %s4 = inlined_call_operand.hbm [shape: f32[2,1,512], index: 4, kind: input, shape index: {}]
  %s5 = inlined_call_operand.vmem [shape: f32[16,1], index: 5, kind: input, shape index: {}]
  %s6 = inlined_call_operand.vmem [shape: f32[2,8,128], index: 6, kind: input, shape index: {}]
  %s7 = inlined_call_operand.hbm [shape: f32[2,16,128], index: 7, kind: output, shape index: {0}]
  %s8 = inlined_call_operand.hbm [shape: f32[2,16,128], index: 8, kind: output, shape index: {1}]
  %9 = xla_tuple %s7, %s8
  %s10 = sld [smem:[#allocation0]]
  $region97: #{tpu_custom_call.1} parent=0
    _
  %s12 = ssub.s32 1, %s10
  %s13 = scalar_select 0, %s12, %s10
  $region1: #{tpu_custom_call.1} parent=0
    #allocation3 [shape = 'u8[4096]{0}', space=vmem, size = 0x1000, scoped, tag = 'input window, operand 0, single buffered']
    #allocation4 [shape = 's32[2]{0}', space=sflag, size = 0x8, scoped, tag = 'scoped memory for tpu_custom_call.1']
    #allocation5 [shape = 's32[2]{0}', space=sflag, size = 0x8, scoped, tag = 'scoped memory for tpu_custom_call.1']
    #allocation6 [shape = 'u8[16384]{0}', space=vmem, size = 0x4000, scoped, tag = 'input window, operand 1']
    #allocation7 [shape = 's32[2]{0}', space=sflag, size = 0x8, scoped, tag = 'scoped memory for tpu_custom_call.1']
    #allocation8 [shape = 'u8[16384]{0}', space=vmem, size = 0x4000, scoped, tag = 'input window, operand 2']
    #allocation9 [shape = 'u8[524288]{0}', space=vmem, size = 0x80000, scoped, tag = 'input window, operand 3']
    #allocation10 [shape = 's32[2]{0}', space=sflag, size = 0x8, scoped, tag = 'scoped memory for tpu_custom_call.1']
    #allocation11 [shape = 'u8[4096]{0}', space=vmem, size = 0x1000, scoped, tag = 'input window, operand 4']
    #allocation12 [shape = 'u8[16384]{0}', space=vmem, size = 0x4000, scoped, tag = 'output window, operand 0']
    #allocation13 [shape = 'u8[16384]{0}', space=vmem, size = 0x4000, scoped, tag = 'output window, operand 1']
    #allocation14 [shape = 's32[2]{0}', space=sflag, size = 0x8, scoped, tag = 'scoped memory for tpu_custom_call.1']
    %14 = vsyncpa [#allocation4], 0
    %15 = vsyncpa [#allocation7], 0
    %s16 = scalar_lea.sflag [#allocation7], 1
    %17 = vsyncpa %s16, 0
    %18 = vsyncpa [#allocation10], 0
    %s19 = scalar_lea.sflag [#allocation10], 1
    %20 = vsyncpa %s19, 0
    %21 = vsyncpa [#allocation5], 0
    %s22 = scalar_lea.sflag [#allocation5], 1
    %23 = vsyncpa %s22, 0
    %24 = vsyncpa [#allocation14], 0
    %s25 = scalar_lea.sflag [#allocation14], 1
    %26 = vsyncpa %s25, 0
    loop: start=0, step=1, limit=4
    $region2: #{tpu_custom_call.1} parent=1 // loop_pre_header
      _
    $region3: #{tpu_custom_call.1} parent=1 // loop_header
      %s28 = sphi 0, %s32
      %p29 = scmp.ge.s32.totalorder %s28, 4
      %s35 = sphi 0, %s47
      %s36 = sphi 0, %s43
      %s37 = sphi 0, %s35
      %s38 = sphi 0, %s36
      %s39 = sphi 0, %s37
      %s40 = sphi 0, %s38
      %s50 = sphi 0, %s52
      %s53 = sphi 0, %s50
      %s54 = sphi 0, %s53
      %s70 = sphi 0, %s54
      %s78 = sphi 0, %s80
      %s81 = sphi 0, %s78
      %s82 = sphi 0, %s81
      %s98 = sphi 0, %s82
      %s106 = sphi 0, %s108
      %s109 = sphi 0, %s106
      %s110 = sphi 0, %s109
      %s126 = sphi 0, %s110
      %s132 = sphi 0, %s134
      %s135 = sphi 0, %s132
      %s136 = sphi 0, %s135
      %s152 = sphi 0, %s136
      %s158 = sphi 0, %s160
      %s161 = sphi 0, %s158
      %s162 = sphi 0, %s161
      %s178 = sphi 0, %s162
      %s184 = sphi 0, %s186
      %s187 = sphi 0, %s184
      %s188 = sphi 0, %s187
      %s204 = sphi 0, %s188
      %s210 = sphi 0, %s212
      %s213 = sphi 0, %s210
      %s214 = sphi 0, %s213
      %s230 = sphi 0, %s214
      %s238 = sphi 0, %s240
      %s241 = sphi 0, %s238
      %s242 = sphi 0, %s241
      %s258 = sphi 0, %s242
      %s266 = sphi 0, %s268
      %s269 = sphi 0, %s266
      %s270 = sphi 0, %s269
      %s286 = sphi 0, %s270
    $region4: #{tpu_custom_call.1} parent=1 // loop_header_branch
      %31 = sbr.rel (%p29) target = $region8
    $region5: #{tpu_custom_call.1} parent=1 // loop_body
      %s33 = ssub.s32 %s28, 1
      %s34 = ssub.s32 %s28, 2
      %s41 = sadd.s32 1, %s36
      %p42 = scmp.ge.s32.totalorder %s41, 2
      %s43 = scalar_select %p42, 0, %s41
      %s44 = sadd.s32 1, %s35
      %s45 = scalar_select %p42, %s44, %s35
      %p46 = scmp.ge.s32.totalorder %s45, 1
      %s47 = scalar_select %p46, 0, %s45
      %s48 = ssub.s32 %s35, %s47
      %p49 = scmp.eq.s32.totalorder %s48, 0
      %s51 = sadd.s32 %s50, 1
      %s52 = scalar_select %p49, %s50, %s51
      %p55 = pneg %p49
      %p56 = scmp.eq.s32.totalorder %s28, 1
      %p57 = por %p55, %p56
      %p58 = scmp.ne.s32.totalorder %s50, %s53
      %p59 = scmp.eq.s32.totalorder %s28, 0
      %p60 = por %p58, %p59
      %p61 = scmp.ne.s32.totalorder %s50, %s53
      %p62 = scmp.eq.s32.totalorder %s33, 1
      %p63 = por %p61, %p62
      %p64 = scmp.ne.s32.totalorder %s53, %s54
      %p65 = scmp.eq.s32.totalorder %s33, 0
      %p66 = por %p64, %p65
      %p67 = scmp.ne.s32.totalorder %s53, %s54
      %p68 = scmp.eq.s32.totalorder %s34, 1
      %p69 = por %p67, %p68
      %p71 = scmp.ne.s32.totalorder %s54, %s70
      %p72 = scmp.eq.s32.totalorder %s34, 0
      %p73 = por %p71, %p72
      %s74 = ssub.s32 %s36, %s43
      %s75 = ssub.s32 %s35, %s47
      %s76 = sor.u32 %s74, %s75
      %p77 = scmp.eq.s32.totalorder %s76, 0
      %s79 = sadd.s32 %s78, 1
      %s80 = scalar_select %p77, %s78, %s79
      %p83 = pneg %p77
      %p84 = scmp.eq.s32.totalorder %s28, 1
      %p85 = por %p83, %p84
      %p86 = scmp.ne.s32.totalorder %s78, %s81
      %p87 = scmp.eq.s32.totalorder %s28, 0
      %p88 = por %p86, %p87
      %p89 = scmp.ne.s32.totalorder %s78, %s81
      %p90 = scmp.eq.s32.totalorder %s33, 1
      %p91 = por %p89, %p90
      %p92 = scmp.ne.s32.totalorder %s81, %s82
      %p93 = scmp.eq.s32.totalorder %s33, 0
      %p94 = por %p92, %p93
      %p95 = scmp.ne.s32.totalorder %s81, %s82
      %p96 = scmp.eq.s32.totalorder %s34, 1
      %p97 = por %p95, %p96
      %p99 = scmp.ne.s32.totalorder %s82, %s98
      %p100 = scmp.eq.s32.totalorder %s34, 0
      %p101 = por %p99, %p100
      %s102 = ssub.s32 %s36, %s43
      %s103 = ssub.s32 %s35, %s47
      %s104 = sor.u32 %s102, %s103
      %p105 = scmp.eq.s32.totalorder %s104, 0
      %s107 = sadd.s32 %s106, 1
      %s108 = scalar_select %p105, %s106, %s107
      %p111 = pneg %p105
      %p112 = scmp.eq.s32.totalorder %s28, 1
      %p113 = por %p111, %p112
      %p114 = scmp.ne.s32.totalorder %s106, %s109
      %p115 = scmp.eq.s32.totalorder %s28, 0
      %p116 = por %p114, %p115
      %p117 = scmp.ne.s32.totalorder %s106, %s109
      %p118 = scmp.eq.s32.totalorder %s33, 1
      %p119 = por %p117, %p118
      %p120 = scmp.ne.s32.totalorder %s109, %s110
      %p121 = scmp.eq.s32.totalorder %s33, 0
      %p122 = por %p120, %p121
      %p123 = scmp.ne.s32.totalorder %s109, %s110
      %p124 = scmp.eq.s32.totalorder %s34, 1
      %p125 = por %p123, %p124
      %p127 = scmp.ne.s32.totalorder %s110, %s126
      %p128 = scmp.eq.s32.totalorder %s34, 0
      %p129 = por %p127, %p128
      %s130 = ssub.s32 %s36, %s43
      %p131 = scmp.eq.s32.totalorder %s130, 0
      %s133 = sadd.s32 %s132, 1
      %s134 = scalar_select %p131, %s132, %s133
      %p137 = pneg %p131
      %p138 = scmp.eq.s32.totalorder %s28, 1
      %p139 = por %p137, %p138
      %p140 = scmp.ne.s32.totalorder %s132, %s135
      %p141 = scmp.eq.s32.totalorder %s28, 0
      %p142 = por %p140, %p141
      %p143 = scmp.ne.s32.totalorder %s132, %s135
      %p144 = scmp.eq.s32.totalorder %s33, 1
      %p145 = por %p143, %p144
      %p146 = scmp.ne.s32.totalorder %s135, %s136
      %p147 = scmp.eq.s32.totalorder %s33, 0
      %p148 = por %p146, %p147
      %p149 = scmp.ne.s32.totalorder %s135, %s136
      %p150 = scmp.eq.s32.totalorder %s34, 1
      %p151 = por %p149, %p150
      %p153 = scmp.ne.s32.totalorder %s136, %s152
      %p154 = scmp.eq.s32.totalorder %s34, 0
      %p155 = por %p153, %p154
      %s156 = ssub.s32 %s36, %s43
      %p157 = scmp.eq.s32.totalorder %s156, 0
      %s159 = sadd.s32 %s158, 1
      %s160 = scalar_select %p157, %s158, %s159
      %p163 = pneg %p157
      %p164 = scmp.eq.s32.totalorder %s28, 1
      %p165 = por %p163, %p164
      %p166 = scmp.ne.s32.totalorder %s158, %s161
      %p167 = scmp.eq.s32.totalorder %s28, 0
      %p168 = por %p166, %p167
      %p169 = scmp.ne.s32.totalorder %s158, %s161
      %p170 = scmp.eq.s32.totalorder %s33, 1
      %p171 = por %p169, %p170
      %p172 = scmp.ne.s32.totalorder %s161, %s162
      %p173 = scmp.eq.s32.totalorder %s33, 0
      %p174 = por %p172, %p173
      %p175 = scmp.ne.s32.totalorder %s161, %s162
      %p176 = scmp.eq.s32.totalorder %s34, 1
      %p177 = por %p175, %p176
      %p179 = scmp.ne.s32.totalorder %s162, %s178
      %p180 = scmp.eq.s32.totalorder %s34, 0
      %p181 = por %p179, %p180
      %s182 = ssub.s32 %s35, %s47
      %p183 = scmp.eq.s32.totalorder %s182, 0
      %s185 = sadd.s32 %s184, 1
      %s186 = scalar_select %p183, %s184, %s185
      %p189 = pneg %p183
      %p190 = scmp.eq.s32.totalorder %s28, 1
      %p191 = por %p189, %p190
      %p192 = scmp.ne.s32.totalorder %s184, %s187
      %p193 = scmp.eq.s32.totalorder %s28, 0
      %p194 = por %p192, %p193
      %p195 = scmp.ne.s32.totalorder %s184, %s187
      %p196 = scmp.eq.s32.totalorder %s33, 1
      %p197 = por %p195, %p196
      %p198 = scmp.ne.s32.totalorder %s187, %s188
      %p199 = scmp.eq.s32.totalorder %s33, 0
      %p200 = por %p198, %p199
      %p201 = scmp.ne.s32.totalorder %s187, %s188
      %p202 = scmp.eq.s32.totalorder %s34, 1
      %p203 = por %p201, %p202
      %p205 = scmp.ne.s32.totalorder %s188, %s204
      %p206 = scmp.eq.s32.totalorder %s34, 0
      %p207 = por %p205, %p206
      %s208 = ssub.s32 %s36, %s43
      %p209 = scmp.eq.s32.totalorder %s208, 0
      %s211 = sadd.s32 %s210, 1
      %s212 = scalar_select %p209, %s210, %s211
      %p215 = pneg %p209
      %p216 = scmp.eq.s32.totalorder %s28, 1
      %p217 = por %p215, %p216
      %p218 = scmp.ne.s32.totalorder %s210, %s213
      %p219 = scmp.eq.s32.totalorder %s28, 0
      %p220 = por %p218, %p219
      %p221 = scmp.ne.s32.totalorder %s210, %s213
      %p222 = scmp.eq.s32.totalorder %s33, 1
      %p223 = por %p221, %p222
      %p224 = scmp.ne.s32.totalorder %s213, %s214
      %p225 = scmp.eq.s32.totalorder %s33, 0
      %p226 = por %p224, %p225
      %p227 = scmp.ne.s32.totalorder %s213, %s214
      %p228 = scmp.eq.s32.totalorder %s34, 1
      %p229 = por %p227, %p228
      %p231 = scmp.ne.s32.totalorder %s214, %s230
      %p232 = scmp.eq.s32.totalorder %s34, 0
      %p233 = por %p231, %p232
      %s234 = ssub.s32 %s36, %s43
      %s235 = ssub.s32 %s35, %s47
      %s236 = sor.u32 %s234, %s235
      %p237 = scmp.eq.s32.totalorder %s236, 0
      %s239 = sadd.s32 %s238, 1
      %s240 = scalar_select %p237, %s238, %s239
      %p243 = pneg %p237
      %p244 = scmp.eq.s32.totalorder %s28, 1
      %p245 = por %p243, %p244
      %p246 = scmp.ne.s32.totalorder %s238, %s241
      %p247 = scmp.eq.s32.totalorder %s28, 0
      %p248 = por %p246, %p247
      %p249 = scmp.ne.s32.totalorder %s238, %s241
      %p250 = scmp.eq.s32.totalorder %s33, 1
      %p251 = por %p249, %p250
      %p252 = scmp.ne.s32.totalorder %s241, %s242
      %p253 = scmp.eq.s32.totalorder %s33, 0
      %p254 = por %p252, %p253
      %p255 = scmp.ne.s32.totalorder %s241, %s242
      %p256 = scmp.eq.s32.totalorder %s34, 1
      %p257 = por %p255, %p256
      %p259 = scmp.ne.s32.totalorder %s242, %s258
      %p260 = scmp.eq.s32.totalorder %s34, 0
      %p261 = por %p259, %p260
      %s262 = ssub.s32 %s36, %s43
      %s263 = ssub.s32 %s35, %s47
      %s264 = sor.u32 %s262, %s263
      %p265 = scmp.eq.s32.totalorder %s264, 0
      %s267 = sadd.s32 %s266, 1
      %s268 = scalar_select %p265, %s266, %s267
      %p271 = pneg %p265
      %p272 = scmp.eq.s32.totalorder %s28, 1
      %p273 = por %p271, %p272
      %p274 = scmp.ne.s32.totalorder %s266, %s269
      %p275 = scmp.eq.s32.totalorder %s28, 0
      %p276 = por %p274, %p275
      %p277 = scmp.ne.s32.totalorder %s266, %s269
      %p278 = scmp.eq.s32.totalorder %s33, 1
      %p279 = por %p277, %p278
      %p280 = scmp.ne.s32.totalorder %s269, %s270
      %p281 = scmp.eq.s32.totalorder %s33, 0
      %p282 = por %p280, %p281
      %p283 = scmp.ne.s32.totalorder %s269, %s270
      %p284 = scmp.eq.s32.totalorder %s34, 1
      %p285 = por %p283, %p284
      %p287 = scmp.ne.s32.totalorder %s270, %s286
      %p288 = scmp.eq.s32.totalorder %s34, 0
      %p289 = por %p287, %p288
      %p290 = scmp.le.s32.totalorder 1, %s28
      %p291 = scmp.lt.s32.totalorder %s28, 3
      %p292 = pnand %p290, %p291
      %p293 = pneg %p292
      // Predicated region
      $region9: #{tpu_custom_call.1} parent=5 // pred_check
        _
      $region10: #{tpu_custom_call.1} parent=5 // pred_check_branch
        %295 = sbr.rel (%p292) target = $region12
      $region11: #{tpu_custom_call.1} parent=5 // pred_region
        %s296 = ssub.s32 %s28, 1
        // Predicated region
        $region13: #{tpu_custom_call.1} parent=11 // pred_check
          %p297 = pneg %p66
        $region14: #{tpu_custom_call.1} parent=11 // pred_check_branch
          %299 = sbr.rel (%p297) target = $region16
        $region15: #{tpu_custom_call.1} parent=11 // pred_region
          %s300 = smul.u32 2, %s37
          %302 = vsyncadd [#allocation4], 0
          %s303 = smul.addr %s300, 4
          %s304 = scalar_lea.hbm %s0, %s303
          %s305 = sshll.u32 %s304, 4
          %s306 = int_to_ptr.hbm [resolvable:$true] %s305
          %s307 = sshll.u32 [#allocation3], 4
          %s308 = int_to_ptr.vmem [resolvable:$true] %s307
          %313 = dma.hbm_to_vmem [thread:$0]  %s306, 128, %s308, [#allocation4], 64, 64, 4
        $region16: #{tpu_custom_call.1} parent=11 // pred_fallthru
          _
        // Predicated region
        $region17: #{tpu_custom_call.1} parent=11 // pred_check
          %p314 = pneg %p200
        $region18: #{tpu_custom_call.1} parent=11 // pred_check_branch
          %316 = sbr.rel (%p314) target = $region20
        $region19: #{tpu_custom_call.1} parent=11 // pred_region
          %s317 = smul.u32 2, %s37
          %p318 = scmp.lt.s32.totalorder %s317, 1
          %s319 = scalar_select %p318, %s317, 1
          %s320 = smul.addr %s319, 8
          %s321 = scalar_lea.vmem %s5, %s320
          %s322 = smul.u32 2, %s37
        $region20: #{tpu_custom_call.1} parent=11 // pred_fallthru
          _
      $region12: #{tpu_custom_call.1} parent=5 // pred_fallthru
        _
      %p323 = scmp.lt.s32.totalorder %s28, 2
      // Predicated region
      $region21: #{tpu_custom_call.1} parent=5 // pred_check
        %p324 = pneg %p323
      $region22: #{tpu_custom_call.1} parent=5 // pred_check_branch
        %326 = sbr.rel (%p324) target = $region24
      $region23: #{tpu_custom_call.1} parent=5 // pred_region
        // Predicated region
        $region25: #{tpu_custom_call.1} parent=23 // pred_check
          %p327 = pneg %p88
        $region26: #{tpu_custom_call.1} parent=23 // pred_check_branch
          %329 = sbr.rel (%p327) target = $region28
        $region27: #{tpu_custom_call.1} parent=23 // pred_region
          %s330 = sand.u32 %s28, 1
          %s331 = scalar_lea.sflag [#allocation7], %s330
          %s332 = sand.u32 %s78, 1
          %s333 = smul.addr %s332, 16
          %s334 = scalar_lea.vmem [#allocation6], %s333
          %s335 = smul.u32 2, %s35
          %337 = vsyncadd %s331, 0
          %s338 = smul.addr %s36, 2
          %s339 = sadd.s32 %s335, %s338
          %s340 = smul.addr %s339, 8
          %s341 = scalar_lea.hbm %s1, %s340
          %s342 = sshll.u32 %s341, 4
          %s343 = int_to_ptr.hbm [resolvable:$true] %s342
          %s344 = sshll.u32 %s334, 4
          %s345 = int_to_ptr.vmem [resolvable:$true] %s344
          %350 = dma.hbm_to_vmem [thread:$0]  %s343, 256, %s345, %s331, 128, 128, 8
        $region28: #{tpu_custom_call.1} parent=23 // pred_fallthru
          _
        // Predicated region
        $region29: #{tpu_custom_call.1} parent=23 // pred_check
          %p351 = pneg %p116
        $region30: #{tpu_custom_call.1} parent=23 // pred_check_branch
          %353 = sbr.rel (%p351) target = $region32
        $region31: #{tpu_custom_call.1} parent=23 // pred_region
          %s354 = sand.u32 %s28, 1
          %s355 = scalar_lea.sflag [#allocation7], %s354
          %s356 = sand.u32 %s106, 1
          %s357 = smul.addr %s356, 16
          %s358 = scalar_lea.vmem [#allocation8], %s357
          %s359 = smul.u32 2, %s35
          %361 = vsyncadd %s355, 0
          %s362 = smul.addr %s36, 2
          %s363 = sadd.s32 %s359, %s362
          %s364 = smul.addr %s363, 8
          %s365 = scalar_lea.hbm %s2, %s364
          %s366 = sshll.u32 %s365, 4
          %s367 = int_to_ptr.hbm [resolvable:$true] %s366
          %s368 = sshll.u32 %s358, 4
          %s369 = int_to_ptr.vmem [resolvable:$true] %s368
          %374 = dma.hbm_to_vmem [thread:$0]  %s367, 256, %s369, %s355, 128, 128, 8
        $region32: #{tpu_custom_call.1} parent=23 // pred_fallthru
          _
        // Predicated region
        $region33: #{tpu_custom_call.1} parent=23 // pred_check
          %p375 = pneg %p142
        $region34: #{tpu_custom_call.1} parent=23 // pred_check_branch
          %377 = sbr.rel (%p375) target = $region36
        $region35: #{tpu_custom_call.1} parent=23 // pred_region
          %s378 = sand.u32 %s28, 1
          %s379 = scalar_lea.sflag [#allocation10], %s378
          %s380 = sand.u32 %s132, 1
          %s381 = smul.addr %s380, 512
          %s382 = scalar_lea.vmem [#allocation9], %s381
          %384 = vsyncadd %s379, 0
          %s385 = smul.addr %s36, 128
          %s386 = smul.addr %s385, 4
          %s387 = scalar_lea.hbm %s3, %s386
          %s388 = sshll.u32 %s387, 4
          %s389 = int_to_ptr.hbm [resolvable:$true] %s388
          %s390 = sshll.u32 %s382, 4
          %s391 = int_to_ptr.vmem [resolvable:$true] %s390
          %396 = dma.hbm_to_vmem [thread:$0]  %s389, 8192, %s391, %s379, 256, 256, 16
        $region36: #{tpu_custom_call.1} parent=23 // pred_fallthru
          _
        // Predicated region
        $region37: #{tpu_custom_call.1} parent=23 // pred_check
          %p397 = pneg %p168
        $region38: #{tpu_custom_call.1} parent=23 // pred_check_branch
          %399 = sbr.rel (%p397) target = $region40
        $region39: #{tpu_custom_call.1} parent=23 // pred_region
          %s400 = sand.u32 %s28, 1
          %s401 = scalar_lea.sflag [#allocation10], %s400
          %s402 = sand.u32 %s158, 1
          %s403 = smul.addr %s402, 4
          %s404 = scalar_lea.vmem [#allocation11], %s403
          %406 = vsyncadd %s401, 0
          %s407 = smul.addr %s36, 4
          %s408 = scalar_lea.hbm %s4, %s407
          %s410 = sshll.u32 %s408, 4
          %s411 = int_to_ptr.hbm [resolvable:$true] %s410
          %s412 = sshll.u32 %s404, 4
          %s413 = int_to_ptr.vmem [resolvable:$true] %s412
          %415 = dma.hbm_to_vmem [thread:$0]  %s411, 64, %s413, %s401
        $region40: #{tpu_custom_call.1} parent=23 // pred_fallthru
          _
        // Predicated region
        $region41: #{tpu_custom_call.1} parent=23 // pred_check
          %p416 = pneg %p220
        $region42: #{tpu_custom_call.1} parent=23 // pred_check_branch
          %418 = sbr.rel (%p416) target = $region44
        $region43: #{tpu_custom_call.1} parent=23 // pred_region
          %p419 = scmp.lt.s32.totalorder %s36, 1
          %s420 = scalar_select %p419, %s36, 1
          %s421 = smul.addr %s420, 8
          %s422 = scalar_lea.vmem %s6, %s421
        $region44: #{tpu_custom_call.1} parent=23 // pred_fallthru
          _
      $region24: #{tpu_custom_call.1} parent=5 // pred_fallthru
        _
      %p423 = scmp.le.s32.totalorder 1, %s28
      %p424 = scmp.lt.s32.totalorder %s28, 3
      %p425 = pnand %p423, %p424
      %p426 = pneg %p425
      // Predicated region
      $region45: #{tpu_custom_call.1} parent=5 // pred_check
        _
      $region46: #{tpu_custom_call.1} parent=5 // pred_check_branch
        %428 = sbr.rel (%p425) target = $region48
      $region47: #{tpu_custom_call.1} parent=5 // pred_region
        %s429 = ssub.s32 %s28, 1
        // Predicated region
        $region49: #{tpu_custom_call.1} parent=47 // pred_check
          %p430 = pneg %p66
        $region50: #{tpu_custom_call.1} parent=47 // pred_check_branch
          %432 = sbr.rel (%p430) target = $region52
        $region51: #{tpu_custom_call.1} parent=47 // pred_region
          %434 = dma.done [#allocation4], 128
        $region52: #{tpu_custom_call.1} parent=47 // pred_fallthru
          _
        %s435 = sand.u32 %s33, 1
        %s436 = scalar_lea.sflag [#allocation7], %s435
        %s437 = sand.u32 %s81, 1
        %s438 = smul.addr %s437, 16
        %s439 = scalar_lea.vmem [#allocation6], %s438
        // Predicated region
        $region53: #{tpu_custom_call.1} parent=47 // pred_check
          %p440 = pneg %p94
        $region54: #{tpu_custom_call.1} parent=47 // pred_check_branch
          %442 = sbr.rel (%p440) target = $region56
        $region55: #{tpu_custom_call.1} parent=47 // pred_region
          %444 = dma.done %s436, 256
        $region56: #{tpu_custom_call.1} parent=47 // pred_fallthru
          _
        %s445 = sand.u32 %s33, 1
        %s446 = scalar_lea.sflag [#allocation7], %s445
        %s447 = sand.u32 %s109, 1
        %s448 = smul.addr %s447, 16
        %s449 = scalar_lea.vmem [#allocation8], %s448
        // Predicated region
        $region57: #{tpu_custom_call.1} parent=47 // pred_check
          %p450 = pneg %p122
        $region58: #{tpu_custom_call.1} parent=47 // pred_check_branch
          %452 = sbr.rel (%p450) target = $region60
        $region59: #{tpu_custom_call.1} parent=47 // pred_region
          %454 = dma.done %s446, 256
        $region60: #{tpu_custom_call.1} parent=47 // pred_fallthru
          _
        %s455 = sand.u32 %s33, 1
        %s456 = scalar_lea.sflag [#allocation10], %s455
        %s457 = sand.u32 %s135, 1
        %s458 = smul.addr %s457, 512
        %s459 = scalar_lea.vmem [#allocation9], %s458
        // Predicated region
        $region61: #{tpu_custom_call.1} parent=47 // pred_check
          %p460 = pneg %p148
        $region62: #{tpu_custom_call.1} parent=47 // pred_check_branch
          %462 = sbr.rel (%p460) target = $region64
        $region63: #{tpu_custom_call.1} parent=47 // pred_region
          %464 = dma.done %s456, 8192
        $region64: #{tpu_custom_call.1} parent=47 // pred_fallthru
          _
        %s465 = sand.u32 %s33, 1
        %s466 = scalar_lea.sflag [#allocation10], %s465
        %s467 = sand.u32 %s161, 1
        %s468 = smul.addr %s467, 4
        %s469 = scalar_lea.vmem [#allocation11], %s468
        // Predicated region
        $region65: #{tpu_custom_call.1} parent=47 // pred_check
          %p470 = pneg %p174
        $region66: #{tpu_custom_call.1} parent=47 // pred_check_branch
          %472 = sbr.rel (%p470) target = $region68
        $region67: #{tpu_custom_call.1} parent=47 // pred_region
          %474 = dma.done %s466, 64
        $region68: #{tpu_custom_call.1} parent=47 // pred_fallthru
          _
        %p475 = pneg %p66
        %p476 = pneg %p63
        %s477 = sand.u32 %s33, 1
        %s478 = scalar_lea.sflag [#allocation7], %s477
        %s479 = sand.u32 %s81, 1
        %s480 = smul.addr %s479, 16
        %s481 = scalar_lea.vmem [#allocation6], %s480
        %p482 = pneg %p94
        %p483 = pneg %p91
        %s484 = sand.u32 %s33, 1
        %s485 = scalar_lea.sflag [#allocation7], %s484
        %s486 = sand.u32 %s109, 1
        %s487 = smul.addr %s486, 16
        %s488 = scalar_lea.vmem [#allocation8], %s487
        %p489 = pneg %p122
        %p490 = pneg %p119
        %s491 = sand.u32 %s33, 1
        %s492 = scalar_lea.sflag [#allocation10], %s491
        %s493 = sand.u32 %s135, 1
        %s494 = smul.addr %s493, 512
        %s495 = scalar_lea.vmem [#allocation9], %s494
        %p496 = pneg %p148
        %p497 = pneg %p145
        %s498 = sand.u32 %s33, 1
        %s499 = scalar_lea.sflag [#allocation10], %s498
        %s500 = sand.u32 %s161, 1
        %s501 = smul.addr %s500, 4
        %s502 = scalar_lea.vmem [#allocation11], %s501
        %p503 = pneg %p174
        %p504 = pneg %p171
        %s505 = smul.u32 2, %s37
        %p506 = scmp.lt.s32.totalorder %s505, 1
        %s507 = scalar_select %p506, %s505, 1
        %s508 = smul.addr %s507, 8
        %s509 = scalar_lea.vmem %s5, %s508
        %p510 = pneg %p200
        %p511 = pneg %p197
        %p512 = scmp.lt.s32.totalorder %s38, 1
        %s513 = scalar_select %p512, %s38, 1
        %s514 = smul.addr %s513, 8
        %s515 = scalar_lea.vmem %s6, %s514
        %p516 = pneg %p226
        %p517 = pneg %p223
        %p518 = pneg %p254
        %p519 = pneg %p251
        %s520 = sand.u32 %s241, 1
        %s521 = scalar_lea.sflag [#allocation5], %s520
        %s522 = sand.u32 %s241, 1
        %s523 = smul.addr %s522, 16
        %s524 = scalar_lea.vmem [#allocation12], %s523
        %p525 = pneg %p282
        %p526 = pneg %p279
        %s527 = sand.u32 %s269, 1
        %s528 = scalar_lea.sflag [#allocation14], %s527
        %s529 = sand.u32 %s269, 1
        %s530 = smul.addr %s529, 16
        %s531 = scalar_lea.vmem [#allocation13], %s530
        %s532 = smul.u32 2, %s37
        %s533 = smul.u32 2, %s37
        %s534 = smul.u32 2, %s37
        %s535 = smul.u32 2, %s37
        %p536 = scmp.lt.s32.totalorder %s535, 1
        %s537 = scalar_select %p536, %s535, 1
        %s538 = smul.addr %s537, 8
        %s539 = scalar_lea.vmem %s5, %s538
        %s540 = smul.u32 2, %s37
        %p541 = scmp.lt.s32.totalorder %s38, 1
        %s542 = scalar_select %p541, %s38, 1
        %s543 = smul.addr %s542, 8
        %s544 = scalar_lea.vmem %s6, %s543
        %s545 = smul.u32 2, %s37
        %s546 = smul.u32 2, %s37
        %p547 = scmp.eq.s32.totalorder %s38, 0
        // Predicated region
        $region69: #{tpu_custom_call.1} parent=47 // pred_check
          %p548 = pneg %p547
        $region70: #{tpu_custom_call.1} parent=47 // pred_check_branch
          %550 = sbr.rel (%p548) target = $region72
        $region71: #{tpu_custom_call.1} parent=47 // pred_region
          %v551 = vld [vmem:[#allocation3] sm:$0xf]
          %v552 = vld [vmem:[#allocation3 + $0x4] sm:$0xf]
          %553 = vst [vmem:[#allocation2] sm:$0xf] %v551
          %554 = vst [vmem:[#allocation2 + $0x8] sm:$0xf] %v552
        $region72: #{tpu_custom_call.1} parent=47 // pred_fallthru
          _
        %v555 = vld [vmem:[%s439] sm:$0xff]
        %v556 = vld [vmem:[%s439 + $0x8] sm:$0xff]
        %v557 = vld [vmem:[%s449] sm:$0xff]
        %v558 = vld [vmem:[%s449 + $0x8] sm:$0xff]
        %v559 = vpack.c.bf16 %v555, %v555
        %v560 = vpack.c.bf16 %v556, %v556
        %561 = vst [vmem:[#allocation2 + $0x4] sm:$0xf] %v559
        %562 = vst [vmem:[#allocation2 + $0xc] sm:$0xf] %v560
        %v563 = vld [vmem:[#allocation2] sm:$0xff]
        %v564 = vld [vmem:[#allocation2 + $0x8] sm:$0xff]
        %v565 = vld [vmem:[%s459] sm:$0xff]
        %v566 = vld [vmem:[%s459 + $0x8] sm:$0xff]
        %v567 = vld [vmem:[%s459 + $0x10] sm:$0xff]
        %v568 = vld [vmem:[%s459 + $0x18] sm:$0xff]
        %v569 = vld [vmem:[%s459 + $0x20] sm:$0xff]
        %v570 = vld [vmem:[%s459 + $0x28] sm:$0xff]
        %v571 = vld [vmem:[%s459 + $0x30] sm:$0xff]
        %v572 = vld [vmem:[%s459 + $0x38] sm:$0xff]
        %v573 = vld [vmem:[%s459 + $0x40] sm:$0xff]
        %v574 = vld [vmem:[%s459 + $0x48] sm:$0xff]
        %v575 = vld [vmem:[%s459 + $0x50] sm:$0xff]
        %v576 = vld [vmem:[%s459 + $0x58] sm:$0xff]
        %v577 = vld [vmem:[%s459 + $0x60] sm:$0xff]
        %v578 = vld [vmem:[%s459 + $0x68] sm:$0xff]
        %v579 = vld [vmem:[%s459 + $0x70] sm:$0xff]
        %v580 = vld [vmem:[%s459 + $0x78] sm:$0xff]
        %v581 = vld [vmem:[%s459 + $0x80] sm:$0xff]
        %v582 = vld [vmem:[%s459 + $0x88] sm:$0xff]
        %v583 = vld [vmem:[%s459 + $0x90] sm:$0xff]
        %v584 = vld [vmem:[%s459 + $0x98] sm:$0xff]
        %v585 = vld [vmem:[%s459 + $0xa0] sm:$0xff]
        %v586 = vld [vmem:[%s459 + $0xa8] sm:$0xff]
        %v587 = vld [vmem:[%s459 + $0xb0] sm:$0xff]
        %v588 = vld [vmem:[%s459 + $0xb8] sm:$0xff]
        %v589 = vld [vmem:[%s459 + $0xc0] sm:$0xff]
        %v590 = vld [vmem:[%s459 + $0xc8] sm:$0xff]
        %v591 = vld [vmem:[%s459 + $0xd0] sm:$0xff]
        %v592 = vld [vmem:[%s459 + $0xd8] sm:$0xff]
        %v593 = vld [vmem:[%s459 + $0xe0] sm:$0xff]
        %v594 = vld [vmem:[%s459 + $0xe8] sm:$0xff]
        %v595 = vld [vmem:[%s459 + $0xf0] sm:$0xff]
        %v596 = vld [vmem:[%s459 + $0xf8] sm:$0xff]
        %v597 = vld [vmem:[%s459 + $0x100] sm:$0xff]
        %v598 = vld [vmem:[%s459 + $0x108] sm:$0xff]
        %v599 = vld [vmem:[%s459 + $0x110] sm:$0xff]
        %v600 = vld [vmem:[%s459 + $0x118] sm:$0xff]
        %v601 = vld [vmem:[%s459 + $0x120] sm:$0xff]
        %v602 = vld [vmem:[%s459 + $0x128] sm:$0xff]
        %v603 = vld [vmem:[%s459 + $0x130] sm:$0xff]
        %v604 = vld [vmem:[%s459 + $0x138] sm:$0xff]
        %v605 = vld [vmem:[%s459 + $0x140] sm:$0xff]
        %v606 = vld [vmem:[%s459 + $0x148] sm:$0xff]
        %v607 = vld [vmem:[%s459 + $0x150] sm:$0xff]
        %v608 = vld [vmem:[%s459 + $0x158] sm:$0xff]
        %v609 = vld [vmem:[%s459 + $0x160] sm:$0xff]
        %v610 = vld [vmem:[%s459 + $0x168] sm:$0xff]
        %v611 = vld [vmem:[%s459 + $0x170] sm:$0xff]
        %v612 = vld [vmem:[%s459 + $0x178] sm:$0xff]
        %v613 = vld [vmem:[%s459 + $0x180] sm:$0xff]
        %v614 = vld [vmem:[%s459 + $0x188] sm:$0xff]
        %v615 = vld [vmem:[%s459 + $0x190] sm:$0xff]
        %v616 = vld [vmem:[%s459 + $0x198] sm:$0xff]
        %v617 = vld [vmem:[%s459 + $0x1a0] sm:$0xff]
        %v618 = vld [vmem:[%s459 + $0x1a8] sm:$0xff]
        %v619 = vld [vmem:[%s459 + $0x1b0] sm:$0xff]
        %v620 = vld [vmem:[%s459 + $0x1b8] sm:$0xff]
        %v621 = vld [vmem:[%s459 + $0x1c0] sm:$0xff]
        %v622 = vld [vmem:[%s459 + $0x1c8] sm:$0xff]
        %v623 = vld [vmem:[%s459 + $0x1d0] sm:$0xff]
        %v624 = vld [vmem:[%s459 + $0x1d8] sm:$0xff]
        %v625 = vld [vmem:[%s459 + $0x1e0] sm:$0xff]
        %v626 = vld [vmem:[%s459 + $0x1e8] sm:$0xff]
        %v627 = vld [vmem:[%s459 + $0x1f0] sm:$0xff]
        %v628 = vld [vmem:[%s459 + $0x1f8] sm:$0xff]
        %v629 = vld [vmem:[%s469] sm:$0xf]
        %v631 = vperm.slane %v629, 0
        %v632 = vperm.slane %v629, 1
        %v633 = vperm.slane %v629, 2
        %v634 = vperm.slane %v629, 3
        %v641 = vunpack.c.l.b16 %v563
        %v642 = vunpack.c.h.b16 %v563
        %v643 = vunpack.c.l.b16 %v564
        %v644 = vunpack.c.h.b16 %v564
        %v645 = vpack.c.b16 %v643, %v641
        %v646 = vpack.c.b16 %v644, %v642
        %v713 = vunpack.c.l.b16 %v565
        %v714 = vunpack.c.h.b16 %v565
        %v715 = vunpack.c.l.b16 %v566
        %v716 = vunpack.c.h.b16 %v566
        %v717 = vunpack.c.l.b16 %v567
        %v718 = vunpack.c.h.b16 %v567
        %v719 = vunpack.c.l.b16 %v568
        %v720 = vunpack.c.h.b16 %v568
        %v721 = vunpack.c.l.b16 %v569
        %v722 = vunpack.c.h.b16 %v569
        %v723 = vunpack.c.l.b16 %v570
        %v724 = vunpack.c.h.b16 %v570
        %v725 = vunpack.c.l.b16 %v571
        %v726 = vunpack.c.h.b16 %v571
        %v727 = vunpack.c.l.b16 %v572
        %v728 = vunpack.c.h.b16 %v572
        %v729 = vunpack.c.l.b16 %v573
        %v730 = vunpack.c.h.b16 %v573
        %v731 = vunpack.c.l.b16 %v574
        %v732 = vunpack.c.h.b16 %v574
        %v733 = vunpack.c.l.b16 %v575
        %v734 = vunpack.c.h.b16 %v575
        %v735 = vunpack.c.l.b16 %v576
        %v736 = vunpack.c.h.b16 %v576
        %v737 = vunpack.c.l.b16 %v577
        %v738 = vunpack.c.h.b16 %v577
        %v739 = vunpack.c.l.b16 %v578
        %v740 = vunpack.c.h.b16 %v578
        %v741 = vunpack.c.l.b16 %v579
        %v742 = vunpack.c.h.b16 %v579
        %v743 = vunpack.c.l.b16 %v580
        %v744 = vunpack.c.h.b16 %v580
        %v745 = vunpack.c.l.b16 %v581
        %v746 = vunpack.c.h.b16 %v581
        %v747 = vunpack.c.l.b16 %v582
        %v748 = vunpack.c.h.b16 %v582
        %v749 = vunpack.c.l.b16 %v583
        %v750 = vunpack.c.h.b16 %v583
        %v751 = vunpack.c.l.b16 %v584
        %v752 = vunpack.c.h.b16 %v584
        %v753 = vunpack.c.l.b16 %v585
        %v754 = vunpack.c.h.b16 %v585
        %v755 = vunpack.c.l.b16 %v586
        %v756 = vunpack.c.h.b16 %v586
        %v757 = vunpack.c.l.b16 %v587
        %v758 = vunpack.c.h.b16 %v587
        %v759 = vunpack.c.l.b16 %v588
        %v760 = vunpack.c.h.b16 %v588
        %v761 = vunpack.c.l.b16 %v589
        %v762 = vunpack.c.h.b16 %v589
        %v763 = vunpack.c.l.b16 %v590
        %v764 = vunpack.c.h.b16 %v590
        %v765 = vunpack.c.l.b16 %v591
        %v766 = vunpack.c.h.b16 %v591
        %v767 = vunpack.c.l.b16 %v592
        %v768 = vunpack.c.h.b16 %v592
        %v769 = vunpack.c.l.b16 %v593
        %v770 = vunpack.c.h.b16 %v593
        %v771 = vunpack.c.l.b16 %v594
        %v772 = vunpack.c.h.b16 %v594
        %v773 = vunpack.c.l.b16 %v595
        %v774 = vunpack.c.h.b16 %v595
        %v775 = vunpack.c.l.b16 %v596
        %v776 = vunpack.c.h.b16 %v596
        %v777 = vunpack.c.l.b16 %v597
        %v778 = vunpack.c.h.b16 %v597
        %v779 = vunpack.c.l.b16 %v598
        %v780 = vunpack.c.h.b16 %v598
        %v781 = vunpack.c.l.b16 %v599
        %v782 = vunpack.c.h.b16 %v599
        %v783 = vunpack.c.l.b16 %v600
        %v784 = vunpack.c.h.b16 %v600
        %v785 = vunpack.c.l.b16 %v601
        %v786 = vunpack.c.h.b16 %v601
        %v787 = vunpack.c.l.b16 %v602
        %v788 = vunpack.c.h.b16 %v602
        %v789 = vunpack.c.l.b16 %v603
        %v790 = vunpack.c.h.b16 %v603
        %v791 = vunpack.c.l.b16 %v604
        %v792 = vunpack.c.h.b16 %v604
        %v793 = vunpack.c.l.b16 %v605
        %v794 = vunpack.c.h.b16 %v605
        %v795 = vunpack.c.l.b16 %v606
        %v796 = vunpack.c.h.b16 %v606
        %v797 = vunpack.c.l.b16 %v607
        %v798 = vunpack.c.h.b16 %v607
        %v799 = vunpack.c.l.b16 %v608
        %v800 = vunpack.c.h.b16 %v608
        %v801 = vunpack.c.l.b16 %v609
        %v802 = vunpack.c.h.b16 %v609
        %v803 = vunpack.c.l.b16 %v610
        %v804 = vunpack.c.h.b16 %v610
        %v805 = vunpack.c.l.b16 %v611
        %v806 = vunpack.c.h.b16 %v611
        %v807 = vunpack.c.l.b16 %v612
        %v808 = vunpack.c.h.b16 %v612
        %v809 = vunpack.c.l.b16 %v613
        %v810 = vunpack.c.h.b16 %v613
        %v811 = vunpack.c.l.b16 %v614
        %v812 = vunpack.c.h.b16 %v614
        %v813 = vunpack.c.l.b16 %v615
        %v814 = vunpack.c.h.b16 %v615
        %v815 = vunpack.c.l.b16 %v616
        %v816 = vunpack.c.h.b16 %v616
        %v817 = vunpack.c.l.b16 %v617
        %v818 = vunpack.c.h.b16 %v617
        %v819 = vunpack.c.l.b16 %v618
        %v820 = vunpack.c.h.b16 %v618
        %v821 = vunpack.c.l.b16 %v619
        %v822 = vunpack.c.h.b16 %v619
        %v823 = vunpack.c.l.b16 %v620
        %v824 = vunpack.c.h.b16 %v620
        %v825 = vunpack.c.l.b16 %v621
        %v826 = vunpack.c.h.b16 %v621
        %v827 = vunpack.c.l.b16 %v622
        %v828 = vunpack.c.h.b16 %v622
        %v829 = vunpack.c.l.b16 %v623
        %v830 = vunpack.c.h.b16 %v623
        %v831 = vunpack.c.l.b16 %v624
        %v832 = vunpack.c.h.b16 %v624
        %v833 = vunpack.c.l.b16 %v625
        %v834 = vunpack.c.h.b16 %v625
        %v835 = vunpack.c.l.b16 %v626
        %v836 = vunpack.c.h.b16 %v626
        %v837 = vunpack.c.l.b16 %v627
        %v838 = vunpack.c.h.b16 %v627
        %v839 = vunpack.c.l.b16 %v628
        %v840 = vunpack.c.h.b16 %v628
        %v841 = vpack.c.b16 %v717, %v713
        %v842 = vpack.c.b16 %v718, %v714
        %v843 = vpack.c.b16 %v719, %v715
        %v844 = vpack.c.b16 %v720, %v716
        %v845 = vpack.c.b16 %v725, %v721
        %v846 = vpack.c.b16 %v726, %v722
        %v847 = vpack.c.b16 %v727, %v723
        %v848 = vpack.c.b16 %v728, %v724
        %v849 = vpack.c.b16 %v733, %v729
        %v850 = vpack.c.b16 %v734, %v730
        %v851 = vpack.c.b16 %v735, %v731
        %v852 = vpack.c.b16 %v736, %v732
        %v853 = vpack.c.b16 %v741, %v737
        %v854 = vpack.c.b16 %v742, %v738
        %v855 = vpack.c.b16 %v743, %v739
        %v856 = vpack.c.b16 %v744, %v740
        %v857 = vpack.c.b16 %v749, %v745
        %v858 = vpack.c.b16 %v750, %v746
        %v859 = vpack.c.b16 %v751, %v747
        %v860 = vpack.c.b16 %v752, %v748
        %v861 = vpack.c.b16 %v757, %v753
        %v862 = vpack.c.b16 %v758, %v754
        %v863 = vpack.c.b16 %v759, %v755
        %v864 = vpack.c.b16 %v760, %v756
        %v865 = vpack.c.b16 %v765, %v761
        %v866 = vpack.c.b16 %v766, %v762
        %v867 = vpack.c.b16 %v767, %v763
        %v868 = vpack.c.b16 %v768, %v764
        %v869 = vpack.c.b16 %v773, %v769
        %v870 = vpack.c.b16 %v774, %v770
        %v871 = vpack.c.b16 %v775, %v771
        %v872 = vpack.c.b16 %v776, %v772
        %v873 = vpack.c.b16 %v781, %v777
        %v874 = vpack.c.b16 %v782, %v778
        %v875 = vpack.c.b16 %v783, %v779
        %v876 = vpack.c.b16 %v784, %v780
        %v877 = vpack.c.b16 %v789, %v785
        %v878 = vpack.c.b16 %v790, %v786
        %v879 = vpack.c.b16 %v791, %v787
        %v880 = vpack.c.b16 %v792, %v788
        %v881 = vpack.c.b16 %v797, %v793
        %v882 = vpack.c.b16 %v798, %v794
        %v883 = vpack.c.b16 %v799, %v795
        %v884 = vpack.c.b16 %v800, %v796
        %v885 = vpack.c.b16 %v805, %v801
        %v886 = vpack.c.b16 %v806, %v802
        %v887 = vpack.c.b16 %v807, %v803
        %v888 = vpack.c.b16 %v808, %v804
        %v889 = vpack.c.b16 %v813, %v809
        %v890 = vpack.c.b16 %v814, %v810
        %v891 = vpack.c.b16 %v815, %v811
        %v892 = vpack.c.b16 %v816, %v812
        %v893 = vpack.c.b16 %v821, %v817
        %v894 = vpack.c.b16 %v822, %v818
        %v895 = vpack.c.b16 %v823, %v819
        %v896 = vpack.c.b16 %v824, %v820
        %v897 = vpack.c.b16 %v829, %v825
        %v898 = vpack.c.b16 %v830, %v826
        %v899 = vpack.c.b16 %v831, %v827
        %v900 = vpack.c.b16 %v832, %v828
        %v901 = vpack.c.b16 %v837, %v833
        %v902 = vpack.c.b16 %v838, %v834
        %v903 = vpack.c.b16 %v839, %v835
        %v904 = vpack.c.b16 %v840, %v836
        %969 = vmatpush.bf16.msra.mxu0 %v869
        %970 = vmatpush.bf16.msra.mxu0 %v865
        %971 = vmatpush.bf16.msra.mxu0 %v861
        %972 = vmatpush.bf16.msra.mxu0 %v857
        %973 = vmatpush.bf16.msra.mxu0 %v853
        %974 = vmatpush.bf16.msra.mxu0 %v849
        %975 = vmatpush.bf16.msra.mxu0 %v845
        %976 = vmatpush.bf16.msra.mxu0 %v841
        %977 = vmatmul.bf16.gmra.mxu0 %v645
        %v978 = vpop.f32.mrf.mxu0
        %v979 = vadd.f32 %v631, %v978
        %v980 = vpop.f32.mrf.mxu0
        %v981 = vadd.f32 %v631, %v980
        %982 = vdwg.mxu0
        %983 = vmatpush.bf16.msra.mxu0 %v901
        %984 = vmatpush.bf16.msra.mxu0 %v897
        %985 = vmatpush.bf16.msra.mxu0 %v893
        %986 = vmatpush.bf16.msra.mxu0 %v889
        %987 = vmatpush.bf16.msra.mxu0 %v885
        %988 = vmatpush.bf16.msra.mxu0 %v881
        %989 = vmatpush.bf16.msra.mxu0 %v877
        %990 = vmatpush.bf16.msra.mxu0 %v873
        %991 = vmatmul.bf16.gmra.mxu0 %v646
        %v992 = vpop.f32.mrf.mxu0
        %v993 = vadd.f32 %v979, %v992
        %v994 = vpop.f32.mrf.mxu0
        %v995 = vadd.f32 %v981, %v994
        %996 = vdwg.mxu0
        %997 = vmatpush.bf16.msra.mxu0 %v870
        %998 = vmatpush.bf16.msra.mxu0 %v866
        %999 = vmatpush.bf16.msra.mxu0 %v862
        %1000 = vmatpush.bf16.msra.mxu0 %v858
        %1001 = vmatpush.bf16.msra.mxu0 %v854
        %1002 = vmatpush.bf16.msra.mxu0 %v850
        %1003 = vmatpush.bf16.msra.mxu0 %v846
        %1004 = vmatpush.bf16.msra.mxu0 %v842
        %1005 = vmatmul.bf16.gmra.mxu0 %v645
        %v1006 = vpop.f32.mrf.mxu0
        %v1007 = vadd.f32 %v632, %v1006
        %v1008 = vpop.f32.mrf.mxu0
        %v1009 = vadd.f32 %v632, %v1008
        %1010 = vdwg.mxu0
        %1011 = vmatpush.bf16.msra.mxu0 %v902
        %1012 = vmatpush.bf16.msra.mxu0 %v898
        %1013 = vmatpush.bf16.msra.mxu0 %v894
        %1014 = vmatpush.bf16.msra.mxu0 %v890
        %1015 = vmatpush.bf16.msra.mxu0 %v886
        %1016 = vmatpush.bf16.msra.mxu0 %v882
        %1017 = vmatpush.bf16.msra.mxu0 %v878
        %1018 = vmatpush.bf16.msra.mxu0 %v874
        %1019 = vmatmul.bf16.gmra.mxu0 %v646
        %v1020 = vpop.f32.mrf.mxu0
        %v1021 = vadd.f32 %v1007, %v1020
        %v1022 = vpop.f32.mrf.mxu0
        %v1023 = vadd.f32 %v1009, %v1022
        %1024 = vdwg.mxu0
        %1025 = vmatpush.bf16.msra.mxu0 %v871
        %1026 = vmatpush.bf16.msra.mxu0 %v867
        %1027 = vmatpush.bf16.msra.mxu0 %v863
        %1028 = vmatpush.bf16.msra.mxu0 %v859
        %1029 = vmatpush.bf16.msra.mxu0 %v855
        %1030 = vmatpush.bf16.msra.mxu0 %v851
        %1031 = vmatpush.bf16.msra.mxu0 %v847
        %1032 = vmatpush.bf16.msra.mxu0 %v843
        %1033 = vmatmul.bf16.gmra.mxu0 %v645
        %v1034 = vpop.f32.mrf.mxu0
        %v1035 = vadd.f32 %v633, %v1034
        %v1036 = vpop.f32.mrf.mxu0
        %v1037 = vadd.f32 %v633, %v1036
        %1038 = vdwg.mxu0
        %1039 = vmatpush.bf16.msra.mxu0 %v903
        %1040 = vmatpush.bf16.msra.mxu0 %v899
        %1041 = vmatpush.bf16.msra.mxu0 %v895
        %1042 = vmatpush.bf16.msra.mxu0 %v891
        %1043 = vmatpush.bf16.msra.mxu0 %v887
        %1044 = vmatpush.bf16.msra.mxu0 %v883
        %1045 = vmatpush.bf16.msra.mxu0 %v879
        %1046 = vmatpush.bf16.msra.mxu0 %v875
        %1047 = vmatmul.bf16.gmra.mxu0 %v646
        %v1048 = vpop.f32.mrf.mxu0
        %v1049 = vadd.f32 %v1035, %v1048
        %v1050 = vpop.f32.mrf.mxu0
        %v1051 = vadd.f32 %v1037, %v1050
        %1052 = vdwg.mxu0
        %1053 = vmatpush.bf16.msra.mxu0 %v872
        %1054 = vmatpush.bf16.msra.mxu0 %v868
        %1055 = vmatpush.bf16.msra.mxu0 %v864
        %1056 = vmatpush.bf16.msra.mxu0 %v860
        %1057 = vmatpush.bf16.msra.mxu0 %v856
        %1058 = vmatpush.bf16.msra.mxu0 %v852
        %1059 = vmatpush.bf16.msra.mxu0 %v848
        %1060 = vmatpush.bf16.msra.mxu0 %v844
        %1061 = vmatmul.bf16.gmra.mxu0 %v645
        %v1062 = vpop.f32.mrf.mxu0
        %v1063 = vadd.f32 %v634, %v1062
        %v1064 = vpop.f32.mrf.mxu0
        %v1065 = vadd.f32 %v634, %v1064
        %1066 = vdwg.mxu0
        %1067 = vmatpush.bf16.msra.mxu0 %v904
        %1068 = vmatpush.bf16.msra.mxu0 %v900
        %1069 = vmatpush.bf16.msra.mxu0 %v896
        %1070 = vmatpush.bf16.msra.mxu0 %v892
        %1071 = vmatpush.bf16.msra.mxu0 %v888
        %1072 = vmatpush.bf16.msra.mxu0 %v884
        %1073 = vmatpush.bf16.msra.mxu0 %v880
        %1074 = vmatpush.bf16.msra.mxu0 %v876
        %1075 = vmatmul.bf16.gmra.mxu0 %v646
        %v1076 = vpop.f32.mrf.mxu0
        %v1077 = vadd.f32 %v1063, %v1076
        %v1078 = vpop.f32.mrf.mxu0
        %v1079 = vadd.f32 %v1065, %v1078
        %1080 = vdwg.mxu0
        %v1081 = vmul.f32 %v993, 0.5
        %v1082 = vmul.f32 %v1021, 0.5
        %v1083 = vmul.f32 %v1049, 0.5
        %v1084 = vmul.f32 %v995, 0.5
        %v1085 = vmul.f32 %v1023, 0.5
        %v1086 = vmul.f32 %v1051, 0.5
        %v1087 = vtanh.pop %v1081
        %v1088 = vtanh.pop %v1082
        %v1089 = vtanh.pop %v1083
        %v1090 = vtanh.pop %v1084
        %v1091 = vtanh.pop %v1085
        %v1092 = vtanh.pop %v1086
        %v1093 = vmul.f32 %v1087, 0.5
        %v1094 = vmul.f32 %v1088, 0.5
        %v1095 = vmul.f32 %v1089, 0.5
        %v1096 = vmul.f32 %v1090, 0.5
        %v1097 = vmul.f32 %v1091, 0.5
        %v1098 = vmul.f32 %v1092, 0.5
        %v1099 = vadd.f32 %v1093, 0.5
        %v1100 = vadd.f32 %v1094, 0.5
        %v1101 = vadd.f32 %v1095, 0.5
        %v1102 = vadd.f32 %v1096, 0.5
        %v1103 = vadd.f32 %v1097, 0.5
        %v1104 = vadd.f32 %v1098, 0.5
        %v1105 = vtanh.pop %v1077
        %v1106 = vtanh.pop %v1079
        %v1107 = vmul.f32 %v1100, %v557
        %v1108 = vmul.f32 %v1103, %v558
        %v1109 = vmul.f32 %v1099, %v1105
        %v1110 = vmul.f32 %v1102, %v1106
        %v1111 = vadd.f32 %v1107, %v1109
        %v1112 = vadd.f32 %v1108, %v1110
        %v1113 = vtanh.pop %v1111
        %v1114 = vtanh.pop %v1112
        %v1115 = vmul.f32 %v1101, %v1113
        %v1116 = vmul.f32 %v1104, %v1114
        %v1117 = vld [vmem:[%s544] sm:$0xff]
        %v1118 = vld [vmem:[%s539] sm:$0xff]
        %v1119 = vld [vmem:[%s539 + $0x8] sm:$0xff]
        %1121 = vset.pattern.permute.xlu0 0
        %1122 = vperm.xlu0 %1121, %v1118
        %v1123 = vpop.permute.xlu0 %1122
        %1126 = vset.pattern.permute.xlu0 0
        %1127 = vperm.xlu0 %1126, %v1119
        %v1128 = vpop.permute.xlu0 %1127
        %v1130 = vperm.slane %v1117, 0
        %v1131 = vsub.f32 %v1123, %v1130
        %v1132 = vsub.f32 %v1128, %v1130
        %v1133 = vperm.slane %v1117, 1
        %v1134 = vmul.f32 %v1131, %v1133
        %v1135 = vmul.f32 %v1132, %v1133
        %vm1136 = vcmp.lt.f32.partialorder %v1134, 0.0
        %vm1137 = vcmp.lt.f32.partialorder %v1135, 0.0
        %v1138 = vceil.f32 %v1134
        %v1139 = vceil.f32 %v1135
        %v1140 = vfloor.f32 %v1134
        %v1141 = vfloor.f32 %v1135
        %v1142 = vsel %vm1136, %v1138, %v1140
        %v1143 = vsel %vm1137, %v1139, %v1141
        %v1144 = vsub.f32 %v1134, %v1142
        %v1145 = vsub.f32 %v1135, %v1143
        %v1146 = vperm.slane %v1117, 3
        %v1147 = vmul.f32 %v1144, %v1146
        %v1148 = vmul.f32 %v1145, %v1146
        %v1149 = vsub.f32 2.0, %v1147
        %v1150 = vsub.f32 2.0, %v1148
        %v1151 = vmul.f32 %v1144, 0.001
        %v1152 = vmul.f32 %v1145, 0.001
        %v1153 = vperm.slane %v1117, 2
        %vm1154 = vcmp.lt.f32.partialorder %v1144, %v1153
        %vm1155 = vcmp.lt.f32.partialorder %v1145, %v1153
        %v1156 = vsel %vm1154, %v1149, %v1151
        %v1157 = vsel %vm1155, %v1150, %v1152
        %v1158 = vmul.f32 %v1117, 0.5
        %v1159 = vperm.slane %v1158, 2
        %vm1160 = vcmp.lt.f32.partialorder %v1144, %v1159
        %vm1161 = vcmp.lt.f32.partialorder %v1145, %v1159
        %v1162 = vsel %vm1160, %v1147, %v1156
        %v1163 = vsel %vm1161, %v1148, %v1157
        %v1164 = vsub.f32 %v1111, %v557
        %v1165 = vsub.f32 %v1112, %v558
        %v1166 = vmul.f32 %v1162, %v1164
        %v1167 = vmul.f32 %v1163, %v1165
        %v1168 = vadd.f32 %v557, %v1166
        %v1169 = vadd.f32 %v558, %v1167
        %v1170 = vsub.f32 %v1115, %v555
        %v1171 = vsub.f32 %v1116, %v556
        %v1172 = vmul.f32 %v1162, %v1170
        %v1173 = vmul.f32 %v1163, %v1171
        %v1174 = vadd.f32 %v555, %v1172
        %v1175 = vadd.f32 %v556, %v1173
        %1176 = vst [vmem:[%s531] sm:$0xff] %v1168
        %1177 = vst [vmem:[%s531 + $0x8] sm:$0xff] %v1169
        %1178 = vst [vmem:[%s524] sm:$0xff] %v1174
        %1179 = vst [vmem:[%s524 + $0x8] sm:$0xff] %v1175
        %s1180 = sadd.s32 %s38, 1
        %p1181 = scmp.lt.s32.totalorder %s1180, 2
        // Predicated region
        $region73: #{tpu_custom_call.1} parent=47 // pred_check
          %p1182 = pneg %p1181
        $region74: #{tpu_custom_call.1} parent=47 // pred_check_branch
          %1184 = sbr.rel (%p1182) target = $region76
        $region75: #{tpu_custom_call.1} parent=47 // pred_region
          %v1185 = vpack.c.bf16 %v1174, %v1174
          %v1186 = vpack.c.bf16 %v1175, %v1175
          %1187 = vst [vmem:[#allocation2] sm:$0xf] %v1185
          %1188 = vst [vmem:[#allocation2 + $0x8] sm:$0xf] %v1186
        $region76: #{tpu_custom_call.1} parent=47 // pred_fallthru
          _
        %s1189 = sand.u32 %s241, 1
        %s1190 = scalar_lea.sflag [#allocation5], %s1189
        %s1191 = sand.u32 %s241, 1
        %s1192 = smul.addr %s1191, 16
        %s1193 = scalar_lea.vmem [#allocation12], %s1192
        %s1194 = sand.u32 %s269, 1
        %s1195 = scalar_lea.sflag [#allocation14], %s1194
        %s1196 = sand.u32 %s269, 1
        %s1197 = smul.addr %s1196, 16
        %s1198 = scalar_lea.vmem [#allocation13], %s1197
        // Predicated region
        $region77: #{tpu_custom_call.1} parent=47 // pred_check
          %p1199 = pneg %p251
        $region78: #{tpu_custom_call.1} parent=47 // pred_check_branch
          %1201 = sbr.rel (%p1199) target = $region80
        $region79: #{tpu_custom_call.1} parent=47 // pred_region
          %s1202 = smul.u32 2, %s37
          %1204 = vsyncadd %s1190, 0
          %s1205 = smul.addr %s38, 2
          %s1206 = sadd.s32 %s1202, %s1205
          %s1207 = smul.addr %s1206, 8
          %s1208 = scalar_lea.hbm %s7, %s1207
          %s1209 = sshll.u32 %s1193, 4
          %s1210 = int_to_ptr.vmem [resolvable:$true] %s1209
          %s1211 = sshll.u32 %s1208, 4
          %s1212 = int_to_ptr.hbm [resolvable:$true] %s1211
          %1217 = dma.vmem_to_hbm [thread:$0]  %s1210, 256, %s1212, %s1190, 128, 128, 8
        $region80: #{tpu_custom_call.1} parent=47 // pred_fallthru
          _
        // Predicated region
        $region81: #{tpu_custom_call.1} parent=47 // pred_check
          %p1218 = pneg %p279
        $region82: #{tpu_custom_call.1} parent=47 // pred_check_branch
          %1220 = sbr.rel (%p1218) target = $region84
        $region83: #{tpu_custom_call.1} parent=47 // pred_region
          %s1221 = smul.u32 2, %s37
          %1223 = vsyncadd %s1195, 0
          %s1224 = smul.addr %s38, 2
          %s1225 = sadd.s32 %s1221, %s1224
          %s1226 = smul.addr %s1225, 8
          %s1227 = scalar_lea.hbm %s8, %s1226
          %s1228 = sshll.u32 %s1198, 4
          %s1229 = int_to_ptr.vmem [resolvable:$true] %s1228
          %s1230 = sshll.u32 %s1227, 4
          %s1231 = int_to_ptr.hbm [resolvable:$true] %s1230
          %1236 = dma.vmem_to_hbm [thread:$0]  %s1229, 256, %s1231, %s1195, 128, 128, 8
        $region84: #{tpu_custom_call.1} parent=47 // pred_fallthru
          _
      $region48: #{tpu_custom_call.1} parent=5 // pred_fallthru
        _
      %p1237 = scmp.le.s32.totalorder 2, %s28
      // Predicated region
      $region85: #{tpu_custom_call.1} parent=5 // pred_check
        %p1238 = pneg %p1237
      $region86: #{tpu_custom_call.1} parent=5 // pred_check_branch
        %1240 = sbr.rel (%p1238) target = $region88
      $region87: #{tpu_custom_call.1} parent=5 // pred_region
        %s1241 = ssub.s32 %s28, 2
        // Predicated region
        $region89: #{tpu_custom_call.1} parent=87 // pred_check
          %p1242 = pneg %p257
        $region90: #{tpu_custom_call.1} parent=87 // pred_check_branch
          %1244 = sbr.rel (%p1242) target = $region92
        $region91: #{tpu_custom_call.1} parent=87 // pred_region
          %s1245 = sand.u32 %s242, 1
          %s1246 = scalar_lea.sflag [#allocation5], %s1245
          %s1247 = sand.u32 %s242, 1
          %s1248 = smul.addr %s1247, 16
          %s1249 = scalar_lea.vmem [#allocation12], %s1248
          %1251 = dma.done %s1246, 256
        $region92: #{tpu_custom_call.1} parent=87 // pred_fallthru
          _
        // Predicated region
        $region93: #{tpu_custom_call.1} parent=87 // pred_check
          %p1252 = pneg %p285
        $region94: #{tpu_custom_call.1} parent=87 // pred_check_branch
          %1254 = sbr.rel (%p1252) target = $region96
        $region95: #{tpu_custom_call.1} parent=87 // pred_region
          %s1255 = sand.u32 %s270, 1
          %s1256 = scalar_lea.sflag [#allocation14], %s1255
          %s1257 = sand.u32 %s270, 1
          %s1258 = smul.addr %s1257, 16
          %s1259 = scalar_lea.vmem [#allocation13], %s1258
          %1261 = dma.done %s1256, 256
        $region96: #{tpu_custom_call.1} parent=87 // pred_fallthru
          _
      $region88: #{tpu_custom_call.1} parent=5 // pred_fallthru
        _
    $region6: #{tpu_custom_call.1} parent=1 // loop_footer
      %s32 = sadd.s32 1, %s28
    $region7: #{tpu_custom_call.1} parent=1 // loop_footer_branch
      %27 = sbr.rel target = $region3
    $region8: #{tpu_custom_call.1} parent=1 // loop_exit
      _
    %1262 = vsyncpa [#allocation4], 1
    %s1263 = scalar_lea.sflag [#allocation4], 1
    %1264 = vsyncpa %s1263, 1
    %1265 = vsyncpa [#allocation7], 1
    %s1266 = scalar_lea.sflag [#allocation7], 1
    %1267 = vsyncpa %s1266, 1
    %1268 = vsyncpa [#allocation10], 1
    %s1269 = scalar_lea.sflag [#allocation10], 1
    %1270 = vsyncpa %s1269, 1
    %1271 = vsyncpa [#allocation5], 1
    %s1272 = scalar_lea.sflag [#allocation5], 1
    %1273 = vsyncpa %s1272, 1
    %1274 = vsyncpa [#allocation14], 1
    %s1275 = scalar_lea.sflag [#allocation14], 1
    %1276 = vsyncpa %s1275, 1

</llo_original>
